<compile_context>
chip_gen: v6e
topology: v6e:2x2x1
jax: 0.10.0
libtpu: 0.0.40
codegen_flags: <defaults>
</compile_context>

<pallas_src>
import functools
from math import ceil

import jax
import jax.numpy as jnp
from jax.experimental import pallas as pl
from jax.experimental.pallas import tpu as pltpu


def _gcn_window_kernel(
    cnt_ref,                                   # (B,) int32, SMEM (scalar prefetch)
    a_ref, dinv_ref, x_ref,                    # (Nw, Nw) bf16, (Nw, 1) f32, (Nw, F) f32
    w1_ref, b1_ref, w2_ref, b2_ref, w3_ref, b3_ref, w4_ref, b4_ref,
    fw1_ref, fb1_ref, s1_ref, t1_ref,
    fw2_ref, fb2_ref, s2_ref, t2_ref,
    out_ref,                                   # (1, num_classes+1) f32
):
    f32 = jnp.float32
    bf16 = jnp.bfloat16

    a = a_ref[...]            # (Nw, Nw) bf16, entries in {0, 1} (A + I), block-diagonal pad rows are 0
    dinv = dinv_ref[...]      # (Nw, 1)  f32, D^-1/2 (1 on pad rows; pad rows are masked out below)
    h = x_ref[...]            # (Nw, F)  f32

    def norm_agg(m):
        # D^-1/2 (A+I) D^-1/2 @ m with D^-1/2 folded into the activations (no normalized
        # copy of A is ever built).  MXU operands in bf16, f32 accumulation.
        return dinv * jnp.dot(a, (dinv * m).astype(bf16), preferred_element_type=f32)

    def gcn_xw_first(h, w_ref, b_ref):
        hw = jnp.dot(h.astype(bf16), w_ref[...], preferred_element_type=f32)
        return jnp.maximum(norm_agg(hw) + b_ref[...], 0.0)

    def gcn_ax_first(h, w_ref, b_ref):
        ah = norm_agg(h)
        y = jnp.dot(ah.astype(bf16), w_ref[...], preferred_element_type=f32) + b_ref[...]
        return jnp.maximum(y, 0.0)

    h = gcn_xw_first(h, w1_ref, b1_ref)
    h = gcn_xw_first(h, w2_ref, b2_ref)
    h = gcn_xw_first(h, w3_ref, b3_ref)
    # Layer-4 reorder keeps the A matmul at 64 output lanes (matters on v5e's 128-wide
    # MXU; neutral on v6e/v7x which are 256-wide).
    h = gcn_ax_first(h, w4_ref, b4_ref)        # (Nw, 152), h >= 0 after ReLU

    # Fused global_max_pool + MaxPool1d(T): mask pad rows with the prefetched node count
    # and take one max over the node axis.  Valid because h >= 0 and empty windows map to
    # 0 (the original zero-padding semantics).
    cnt = cnt_ref[pl.program_id(0)]
    rows = jax.lax.broadcasted_iota(jnp.int32, h.shape, 0)
    feat = jnp.max(jnp.where(rows < cnt, h, 0.0), axis=0, keepdims=True)   # (1, 152)

    # dropout is identity in eval; fc1 -> bn1(folded) -> fc2 -> bn2(folded) -> sigmoid.
    y = jnp.dot(feat.astype(bf16), fw1_ref[...], preferred_element_type=f32) + fb1_ref[...]
    y = y * s1_ref[...] + t1_ref[...]
    y = jnp.dot(y.astype(bf16), fw2_ref[...], preferred_element_type=f32) + fb2_ref[...]
    y = y * s2_ref[...] + t2_ref[...]
    out_ref[...] = jax.nn.sigmoid(y)


def _fold_bn(gamma, beta, running_mean, running_var, eps=1e-5):
    s = gamma / jnp.sqrt(running_var + eps)
    t = beta - running_mean * s
    return s[None, :], t[None, :]


def init_params(key, *, feature_vector_size=8, feature_multiplier=1, num_classes=17):
    mult = 2 * feature_multiplier
    dims = [feature_vector_size, 8 * mult, 16 * mult, 32 * mult, 76 * mult]
    graph_out = 76 * mult                    # == GRAPH_OUTPUT_SIZE = 152 * feature_multiplier
    keys = jax.random.split(key, 16)
    ki = iter(keys)
    p = {}
    # GCNConv weights stored pre-transposed as (in, out); biases as (1, out).
    for i in range(4):
        cin, cout = dims[i], dims[i + 1]
        p[f"W{i+1}"] = 0.1 * jax.random.normal(next(ki), (cin, cout), jnp.float32)
        p[f"b{i+1}"] = 0.01 * jax.random.normal(next(ki), (1, cout), jnp.float32)
    p["fw1"] = 0.05 * jax.random.normal(next(ki), (graph_out, 512), jnp.float32)
    p["fb1"] = 0.01 * jax.random.normal(next(ki), (1, 512), jnp.float32)
    p["fw2"] = 0.05 * jax.random.normal(next(ki), (512, num_classes + 1), jnp.float32)
    p["fb2"] = 0.01 * jax.random.normal(next(ki), (1, num_classes + 1), jnp.float32)
    # BatchNorm1d (eval mode, running stats) folded into affine scale/shift.
    g1 = 1.0 + 0.1 * jax.random.normal(next(ki), (512,), jnp.float32)
    be1 = 0.1 * jax.random.normal(next(ki), (512,), jnp.float32)
    g2 = 1.0 + 0.1 * jax.random.normal(next(ki), (num_classes + 1,), jnp.float32)
    be2 = 0.1 * jax.random.normal(next(ki), (num_classes + 1,), jnp.float32)
    p["s1"], p["t1"] = _fold_bn(g1, be1, jnp.zeros(512), jnp.ones(512))
    p["s2"], p["t2"] = _fold_bn(g2, be2, jnp.zeros(num_classes + 1), jnp.ones(num_classes + 1))
    return p


@functools.partial(
    jax.jit,
    static_argnames=("num_graphs", "frames_per_window", "num_classes", "max_nodes_per_window"),
)
def graph_action_spotter(x, edge_index, batch, params, *,
                         num_graphs, frames_per_window, num_classes, max_nodes_per_window):
    """x: (N, F) node features; edge_index: (2, E) int; batch: (N,) nondecreasing graph ids.

    max_nodes_per_window (static) must be >= the node count of every frame window.
    """
    n, f = x.shape
    t = frames_per_window
    bsz = ceil(num_graphs / t)
    out_dim = num_classes + 1
    nw = max(8, -(-int(max_nodes_per_window) // 8) * 8)   # round up to sublane multiple
    bf16 = jnp.bfloat16
    f32 = jnp.float32
    i32 = jnp.int32

    src = edge_index[0].astype(i32)
    dst = edge_index[1].astype(i32)

    # Window membership and contiguous local node indices (PyG batch vectors are sorted /
    # nondecreasing, so each window owns a contiguous node range).  Nodes whose window id
    # falls outside the padded range are dropped (mode="drop"), matching prior behavior.
    window_id = batch.astype(i32) // t
    wid_c = jnp.clip(window_id, 0, bsz - 1)
    in_range = (window_id < bsz).astype(i32)
    cnt = jax.ops.segment_sum(in_range, wid_c, num_segments=bsz).astype(i32)   # nodes per window
    off = jnp.concatenate([jnp.zeros((1,), i32), jnp.cumsum(cnt)[:-1].astype(i32)])
    local = jnp.arange(n, dtype=i32) - off[wid_c]

    # Degrees via segment-sum over edges (+1 self-loop) — no dense (N, N) row-sum.
    deg = 1.0 + jax.ops.segment_sum(jnp.ones_like(dst, dtype=f32), dst, num_segments=n)
    dinv = jax.lax.rsqrt(deg)

    # Per-window padded inputs.  No dense (N, N) adjacency is ever built: A+I goes
    # straight into its block-diagonal (B, Nw, Nw) bf16 layout ({0,1} is exact in bf16).
    x_pad = jnp.zeros((bsz, nw, f), f32).at[window_id, local].set(x.astype(f32), mode="drop")
    dinv_pad = jnp.ones((bsz, nw, 1), f32).at[window_id, local, 0].set(dinv, mode="drop")
    a_pad = jnp.zeros((bsz, nw, nw), bf16)
    a_pad = a_pad.at[window_id, local, local].set(1.0, mode="drop")                         # self-loops
    a_pad = a_pad.at[window_id[dst], local[dst], local[src]].set(1.0, mode="drop")          # A[dst, src]

    weights = (
        params["W1"].astype(bf16), params["b1"],
        params["W2"].astype(bf16), params["b2"],
        params["W3"].astype(bf16), params["b3"],
        params["W4"].astype(bf16), params["b4"],
        params["fw1"].astype(bf16), params["fb1"], params["s1"], params["t1"],
        params["fw2"].astype(bf16), params["fb2"], params["s2"], params["t2"],
    )
    blocked = (a_pad, dinv_pad, x_pad)

    c1 = params["W1"].shape[1]
    c2 = params["W2"].shape[1]
    c3 = params["W3"].shape[1]
    c4 = params["W4"].shape[1]
    hidden = params["fw1"].shape[1]

    # Cost hint for XLA scheduling (per window: 4x (XW + A) matmuls + fc head).
    per_window_flops = 2 * nw * (
        f * c1 + nw * c1 +            # layer 1
        c1 * c2 + nw * c2 +           # layer 2
        c2 * c3 + nw * c3 +           # layer 3
        nw * c3 + c3 * c4             # layer 4 (AX first)
    ) + 2 * (c4 * hidden + hidden * out_dim)
    flops = bsz * per_window_flops
    bytes_accessed = (cnt.size * 4
                      + sum(int(a.size) * a.dtype.itemsize for a in blocked + weights)
                      + bsz * out_dim * 4)

    # Explicit scoped-VMEM budget: double-buffered per-window blocks + resident weights +
    # generous activation headroom (defaults are only 16/32 MiB on v5e / v6e+).
    block_bytes = nw * nw * 2 + nw * 4 + nw * f * 4
    weight_bytes = sum(int(w.size) * w.dtype.itemsize for w in weights)
    act_bytes = 8 * nw * max(c4, hidden) * 4
    vmem_limit = min(int(4 * block_bytes + weight_bytes + act_bytes + (8 << 20)), 64 << 20)

    grid_spec = pltpu.PrefetchScalarGridSpec(
        num_scalar_prefetch=1,
        grid=(bsz,),
        in_specs=[
            pl.BlockSpec((None, nw, nw), lambda b, cnt: (b, 0, 0)),
            pl.BlockSpec((None, nw, 1), lambda b, cnt: (b, 0, 0)),
            pl.BlockSpec((None, nw, f), lambda b, cnt: (b, 0, 0)),
        ] + [pl.BlockSpec(memory_space=pltpu.MemorySpace.VMEM)] * len(weights),
        out_specs=pl.BlockSpec((None, 1, out_dim), lambda b, cnt: (b, 0, 0)),
    )

    out = pl.pallas_call(
        _gcn_window_kernel,
        out_shape=jax.ShapeDtypeStruct((bsz, 1, out_dim), jnp.float32),
        grid_spec=grid_spec,
        compiler_params=pltpu.CompilerParams(
            dimension_semantics=("parallel",),
            vmem_limit_bytes=vmem_limit,
        ),
        cost_estimate=pl.CostEstimate(
            flops=int(flops),
            transcendentals=int(bsz * out_dim),
            bytes_accessed=int(bytes_accessed),
        ),
    )(cnt, *blocked, *weights)
    return out.reshape(bsz, out_dim)


def _reference(x, edge_index, batch, params, *, num_graphs, frames_per_window, num_classes):
    """Pure-JAX f32 reference with the original dense semantics."""
    n = x.shape[0]
    bsz = ceil(num_graphs / frames_per_window)
    adj = jnp.zeros((n, n), jnp.float32).at[edge_index[1], edge_index[0]].set(1.0)
    a_hat = adj + jnp.eye(n, dtype=jnp.float32)
    dinv = jax.lax.rsqrt(a_hat.sum(axis=1))
    a_norm = dinv[:, None] * a_hat * dinv[None, :]
    h = x.astype(jnp.float32)
    for i in range(1, 5):
        h = jnp.maximum(a_norm @ (h @ params[f"W{i}"]) + params[f"b{i}"], 0.0)
    pooled = jax.ops.segment_max(h, batch, num_segments=num_graphs)
    pad = bsz * frames_per_window - num_graphs
    pooled = jnp.concatenate([pooled, jnp.zeros((pad, h.shape[1]), jnp.float32)], axis=0)
    pooled = pooled.reshape(bsz, frames_per_window, -1).max(axis=1)
    y = pooled @ params["fw1"] + params["fb1"]
    y = y * params["s1"] + params["t1"]
    y = y @ params["fw2"] + params["fb2"]
    y = y * params["s2"] + params["t2"]
    return jax.nn.sigmoid(y)


if __name__ == "__main__":
    key = jax.random.PRNGKey(0)
    k_x, k_p = jax.random.split(key, 2)

    # Small synthetic PyG-style batch: 64 nodes, 8-dim features, 14 graphs,
    # frames_per_window = 8 (window_size_sec=4, frame_rate=2) -> batch_size = ceil(14/8) = 2.
    N, F = 64, 8
    num_graphs = 14
    frames_per_window = 8
    num_classes = 17

    x = jax.random.normal(k_x, (N, F), jnp.float32)
    batch = (jnp.arange(N) * num_graphs) // N            # nondecreasing graph ids 0..13

    # Chain edges within each graph, symmetrized (no self-loops; GCN adds them).
    src = jnp.arange(N - 1)
    dst = jnp.arange(1, N)
    same = batch[src] == batch[dst]
    src = src[same]
    dst = dst[same]
    edge_index = jnp.stack(
        [jnp.concatenate([src, dst]), jnp.concatenate([dst, src])], axis=0
    ).astype(jnp.int32)

    params = init_params(k_p, feature_vector_size=F, feature_multiplier=1,
                         num_classes=num_classes)

    # Static per-window node cap for the padded layout (known host-side).
    bsz = ceil(num_graphs / frames_per_window)
    max_nodes = int(jnp.max(jnp.bincount(batch // frames_per_window, length=bsz)))

    out = graph_action_spotter(
        x, edge_index, batch, params,
        num_graphs=num_graphs, frames_per_window=frames_per_window,
        num_classes=num_classes, max_nodes_per_window=max_nodes,
    )
    out = jax.block_until_ready(out)

    assert out.shape == (bsz, num_classes + 1)
    assert bool(jnp.all(jnp.isfinite(out)))
    assert bool(jnp.all((out >= 0.0) & (out <= 1.0)))

    ref = _reference(x, edge_index, batch, params,
                     num_graphs=num_graphs, frames_per_window=frames_per_window,
                     num_classes=num_classes)
    assert bool(jnp.all(jnp.abs(out - ref) < 2e-2)), float(jnp.max(jnp.abs(out - ref)))

    print("KERNEL_OK")
</pallas_src>

<mosaic_0001>
module attributes {stable_mosaic.version = 11 : i64} {
  func.func private @main(%arg0: i32) attributes {dimension_semantics = [#tpu.dimension_semantics<core_parallel>], iteration_bounds = array<i64: 2>, tpu.core_type = #tpu.core_type<sc_scalar_subcore>, window_params = []} {
    return
  }
}

module attributes {stable_mosaic.version = 11 : i64} {
  func.func private @main(%arg0: i32) attributes {dimension_semantics = [#tpu.dimension_semantics<core_parallel>], iteration_bounds = array<i64: 2>, tpu.core_type = #tpu.core_type<sc_scalar_subcore>, window_params = []} {
    return
  }
}

module attributes {stable_mosaic.version = 11 : i64} {
  func.func @_gcn_window_kernel(%arg0: i32, %arg1: memref<2xi32, #tpu.memory_space<smem>>, %arg2: memref<1x40x40xbf16, #tpu.memory_space<vmem>>, %arg3: memref<1x40x1xf32, #tpu.memory_space<vmem>>, %arg4: memref<1x40x8xf32, #tpu.memory_space<vmem>>, %arg5: memref<8x16xbf16, #tpu.memory_space<vmem>>, %arg6: memref<1x16xf32, #tpu.memory_space<vmem>>, %arg7: memref<16x32xbf16, #tpu.memory_space<vmem>>, %arg8: memref<1x32xf32, #tpu.memory_space<vmem>>, %arg9: memref<32x64xbf16, #tpu.memory_space<vmem>>, %arg10: memref<1x64xf32, #tpu.memory_space<vmem>>, %arg11: memref<64x152xbf16, #tpu.memory_space<vmem>>, %arg12: memref<1x152xf32, #tpu.memory_space<vmem>>, %arg13: memref<152x512xbf16, #tpu.memory_space<vmem>>, %arg14: memref<1x512xf32, #tpu.memory_space<vmem>>, %arg15: memref<1x512xf32, #tpu.memory_space<vmem>>, %arg16: memref<1x512xf32, #tpu.memory_space<vmem>>, %arg17: memref<512x18xbf16, #tpu.memory_space<vmem>>, %arg18: memref<1x18xf32, #tpu.memory_space<vmem>>, %arg19: memref<1x18xf32, #tpu.memory_space<vmem>>, %arg20: memref<1x18xf32, #tpu.memory_space<vmem>>, %arg21: memref<1x1x18xf32, #tpu.memory_space<vmem>>) attributes {dimension_semantics = [#tpu.dimension_semantics<parallel>], iteration_bounds = array<i64: 2>, scalar_prefetch = 1 : i64, scratch_operands = 0 : i64, tpu.core_type = #tpu.core_type<tc>, window_params = [{transform_indices = @transform_0, window_bounds = array<i64: 1, 40, 40>}, {transform_indices = @transform_1, window_bounds = array<i64: 1, 40, 1>}, {transform_indices = @transform_2, window_bounds = array<i64: 1, 40, 8>}, {pipeline_mode = #tpu.pipeline_mode<synchronous>, transform_indices = @transform_3, window_bounds = array<i64: 8, 16>}, {pipeline_mode = #tpu.pipeline_mode<synchronous>, transform_indices = @transform_4, window_bounds = array<i64: 1, 16>}, {pipeline_mode = #tpu.pipeline_mode<synchronous>, transform_indices = @transform_5, window_bounds = array<i64: 16, 32>}, {pipeline_mode = #tpu.pipeline_mode<synchronous>, transform_indices = @transform_6, window_bounds = array<i64: 1, 32>}, {pipeline_mode = #tpu.pipeline_mode<synchronous>, transform_indices = @transform_7, window_bounds = array<i64: 32, 64>}, {pipeline_mode = #tpu.pipeline_mode<synchronous>, transform_indices = @transform_8, window_bounds = array<i64: 1, 64>}, {pipeline_mode = #tpu.pipeline_mode<synchronous>, transform_indices = @transform_9, window_bounds = array<i64: 64, 152>}, {pipeline_mode = #tpu.pipeline_mode<synchronous>, transform_indices = @transform_10, window_bounds = array<i64: 1, 152>}, {pipeline_mode = #tpu.pipeline_mode<synchronous>, transform_indices = @transform_11, window_bounds = array<i64: 152, 512>}, {pipeline_mode = #tpu.pipeline_mode<synchronous>, transform_indices = @transform_12, window_bounds = array<i64: 1, 512>}, {pipeline_mode = #tpu.pipeline_mode<synchronous>, transform_indices = @transform_13, window_bounds = array<i64: 1, 512>}, {pipeline_mode = #tpu.pipeline_mode<synchronous>, transform_indices = @transform_14, window_bounds = array<i64: 1, 512>}, {pipeline_mode = #tpu.pipeline_mode<synchronous>, transform_indices = @transform_15, window_bounds = array<i64: 512, 18>}, {pipeline_mode = #tpu.pipeline_mode<synchronous>, transform_indices = @transform_16, window_bounds = array<i64: 1, 18>}, {pipeline_mode = #tpu.pipeline_mode<synchronous>, transform_indices = @transform_17, window_bounds = array<i64: 1, 18>}, {pipeline_mode = #tpu.pipeline_mode<synchronous>, transform_indices = @transform_18, window_bounds = array<i64: 1, 18>}, {transform_indices = @transform_19, window_bounds = array<i64: 1, 1, 18>}]} {
    %c0 = arith.constant 0 : index
    %c0_0 = arith.constant 0 : index
    %c0_1 = arith.constant 0 : index
    %0 = vector.load %arg2[%c0, %c0_0, %c0_1] : memref<1x40x40xbf16, #tpu.memory_space<vmem>>, vector<1x40x40xbf16>
    %1 = vector.shape_cast %0 : vector<1x40x40xbf16> to vector<40x40xbf16>
    %c0_2 = arith.constant 0 : index
    %c0_3 = arith.constant 0 : index
    %c0_4 = arith.constant 0 : index
    %2 = vector.load %arg3[%c0_2, %c0_3, %c0_4] : memref<1x40x1xf32, #tpu.memory_space<vmem>>, vector<1x40x1xf32>
    %3 = vector.shape_cast %2 : vector<1x40x1xf32> to vector<40x1xf32>
    %c0_5 = arith.constant 0 : index
    %c0_6 = arith.constant 0 : index
    %c0_7 = arith.constant 0 : index
    %4 = vector.load %arg4[%c0_5, %c0_6, %c0_7] : memref<1x40x8xf32, #tpu.memory_space<vmem>>, vector<1x40x8xf32>
    %5 = vector.shape_cast %4 : vector<1x40x8xf32> to vector<40x8xf32>
    %6 = arith.truncf %5 : vector<40x8xf32> to vector<40x8xbf16>
    %c0_8 = arith.constant 0 : index
    %c0_9 = arith.constant 0 : index
    %7 = vector.load %arg5[%c0_8, %c0_9] : memref<8x16xbf16, #tpu.memory_space<vmem>>, vector<8x16xbf16>
    %cst = arith.constant dense<0.000000e+00> : vector<40x16xf32>
    %8 = tpu.matmul %6, %7, %cst {dimension_numbers = #tpu.dot_dimension_numbers<[1], [0], [0], [1], [0, 0, 1, 1], [], []>} : vector<40x8xbf16>, vector<8x16xbf16>, vector<40x16xf32> -> vector<40x16xf32>
    %9 = vector.broadcast %3 : vector<40x1xf32> to vector<40x16xf32>
    %10 = arith.mulf %9, %8 : vector<40x16xf32>
    %11 = arith.truncf %10 : vector<40x16xf32> to vector<40x16xbf16>
    %cst_10 = arith.constant dense<0.000000e+00> : vector<40x16xf32>
    %12 = tpu.matmul %1, %11, %cst_10 {dimension_numbers = #tpu.dot_dimension_numbers<[1], [0], [0], [1], [0, 0, 1, 1], [], []>} : vector<40x40xbf16>, vector<40x16xbf16>, vector<40x16xf32> -> vector<40x16xf32>
    %13 = vector.broadcast %3 : vector<40x1xf32> to vector<40x16xf32>
    %14 = arith.mulf %13, %12 : vector<40x16xf32>
    %c0_11 = arith.constant 0 : index
    %c0_12 = arith.constant 0 : index
    %15 = vector.load %arg6[%c0_11, %c0_12] : memref<1x16xf32, #tpu.memory_space<vmem>>, vector<1x16xf32>
    %16 = vector.broadcast %15 : vector<1x16xf32> to vector<40x16xf32>
    %17 = arith.addf %14, %16 : vector<40x16xf32>
    %cst_13 = arith.constant 0.000000e+00 : f32
    %18 = vector.broadcast %cst_13 : f32 to vector<40x16xf32>
    %19 = arith.maximumf %17, %18 : vector<40x16xf32>
    %20 = arith.truncf %19 : vector<40x16xf32> to vector<40x16xbf16>
    %c0_14 = arith.constant 0 : index
    %c0_15 = arith.constant 0 : index
    %21 = vector.load %arg7[%c0_14, %c0_15] : memref<16x32xbf16, #tpu.memory_space<vmem>>, vector<16x32xbf16>
    %cst_16 = arith.constant dense<0.000000e+00> : vector<40x32xf32>
    %22 = tpu.matmul %20, %21, %cst_16 {dimension_numbers = #tpu.dot_dimension_numbers<[1], [0], [0], [1], [0, 0, 1, 1], [], []>} : vector<40x16xbf16>, vector<16x32xbf16>, vector<40x32xf32> -> vector<40x32xf32>
    %23 = vector.broadcast %3 : vector<40x1xf32> to vector<40x32xf32>
    %24 = arith.mulf %23, %22 : vector<40x32xf32>
    %25 = arith.truncf %24 : vector<40x32xf32> to vector<40x32xbf16>
    %cst_17 = arith.constant dense<0.000000e+00> : vector<40x32xf32>
    %26 = tpu.matmul %1, %25, %cst_17 {dimension_numbers = #tpu.dot_dimension_numbers<[1], [0], [0], [1], [0, 0, 1, 1], [], []>} : vector<40x40xbf16>, vector<40x32xbf16>, vector<40x32xf32> -> vector<40x32xf32>
    %27 = vector.broadcast %3 : vector<40x1xf32> to vector<40x32xf32>
    %28 = arith.mulf %27, %26 : vector<40x32xf32>
    %c0_18 = arith.constant 0 : index
    %c0_19 = arith.constant 0 : index
    %29 = vector.load %arg8[%c0_18, %c0_19] : memref<1x32xf32, #tpu.memory_space<vmem>>, vector<1x32xf32>
    %30 = vector.broadcast %29 : vector<1x32xf32> to vector<40x32xf32>
    %31 = arith.addf %28, %30 : vector<40x32xf32>
    %cst_20 = arith.constant 0.000000e+00 : f32
    %32 = vector.broadcast %cst_20 : f32 to vector<40x32xf32>
    %33 = arith.maximumf %31, %32 : vector<40x32xf32>
    %34 = arith.truncf %33 : vector<40x32xf32> to vector<40x32xbf16>
    %c0_21 = arith.constant 0 : index
    %c0_22 = arith.constant 0 : index
    %35 = vector.load %arg9[%c0_21, %c0_22] : memref<32x64xbf16, #tpu.memory_space<vmem>>, vector<32x64xbf16>
    %cst_23 = arith.constant dense<0.000000e+00> : vector<40x64xf32>
    %36 = tpu.matmul %34, %35, %cst_23 {dimension_numbers = #tpu.dot_dimension_numbers<[1], [0], [0], [1], [0, 0, 1, 1], [], []>} : vector<40x32xbf16>, vector<32x64xbf16>, vector<40x64xf32> -> vector<40x64xf32>
    %37 = vector.broadcast %3 : vector<40x1xf32> to vector<40x64xf32>
    %38 = arith.mulf %37, %36 : vector<40x64xf32>
    %39 = arith.truncf %38 : vector<40x64xf32> to vector<40x64xbf16>
    %cst_24 = arith.constant dense<0.000000e+00> : vector<40x64xf32>
    %40 = tpu.matmul %1, %39, %cst_24 {dimension_numbers = #tpu.dot_dimension_numbers<[1], [0], [0], [1], [0, 0, 1, 1], [], []>} : vector<40x40xbf16>, vector<40x64xbf16>, vector<40x64xf32> -> vector<40x64xf32>
    %41 = vector.broadcast %3 : vector<40x1xf32> to vector<40x64xf32>
    %42 = arith.mulf %41, %40 : vector<40x64xf32>
    %c0_25 = arith.constant 0 : index
    %c0_26 = arith.constant 0 : index
    %43 = vector.load %arg10[%c0_25, %c0_26] : memref<1x64xf32, #tpu.memory_space<vmem>>, vector<1x64xf32>
    %44 = vector.broadcast %43 : vector<1x64xf32> to vector<40x64xf32>
    %45 = arith.addf %42, %44 : vector<40x64xf32>
    %cst_27 = arith.constant 0.000000e+00 : f32
    %46 = vector.broadcast %cst_27 : f32 to vector<40x64xf32>
    %47 = arith.maximumf %45, %46 : vector<40x64xf32>
    %48 = vector.broadcast %3 : vector<40x1xf32> to vector<40x64xf32>
    %49 = arith.mulf %48, %47 : vector<40x64xf32>
    %50 = arith.truncf %49 : vector<40x64xf32> to vector<40x64xbf16>
    %cst_28 = arith.constant dense<0.000000e+00> : vector<40x64xf32>
    %51 = tpu.matmul %1, %50, %cst_28 {dimension_numbers = #tpu.dot_dimension_numbers<[1], [0], [0], [1], [0, 0, 1, 1], [], []>} : vector<40x40xbf16>, vector<40x64xbf16>, vector<40x64xf32> -> vector<40x64xf32>
    %52 = vector.broadcast %3 : vector<40x1xf32> to vector<40x64xf32>
    %53 = arith.mulf %52, %51 : vector<40x64xf32>
    %54 = arith.truncf %53 : vector<40x64xf32> to vector<40x64xbf16>
    %c0_29 = arith.constant 0 : index
    %c0_30 = arith.constant 0 : index
    %55 = vector.load %arg11[%c0_29, %c0_30] : memref<64x152xbf16, #tpu.memory_space<vmem>>, vector<64x152xbf16>
    %cst_31 = arith.constant dense<0.000000e+00> : vector<40x152xf32>
    %56 = tpu.matmul %54, %55, %cst_31 {dimension_numbers = #tpu.dot_dimension_numbers<[1], [0], [0], [1], [0, 0, 1, 1], [], []>} : vector<40x64xbf16>, vector<64x152xbf16>, vector<40x152xf32> -> vector<40x152xf32>
    %c0_32 = arith.constant 0 : index
    %c0_33 = arith.constant 0 : index
    %57 = vector.load %arg12[%c0_32, %c0_33] : memref<1x152xf32, #tpu.memory_space<vmem>>, vector<1x152xf32>
    %58 = vector.broadcast %57 : vector<1x152xf32> to vector<40x152xf32>
    %59 = arith.addf %56, %58 : vector<40x152xf32>
    %cst_34 = arith.constant 0.000000e+00 : f32
    %60 = vector.broadcast %cst_34 : f32 to vector<40x152xf32>
    %61 = arith.maximumf %59, %60 : vector<40x152xf32>
    %62 = arith.index_cast %arg0 : i32 to index
    %63 = memref.load %arg1[%62] : memref<2xi32, #tpu.memory_space<smem>>
    %64 = tpu.iota {dimensions = array<i32: 0>} : vector<40x152xi32>
    %65 = vector.broadcast %63 : i32 to vector<40x152xi32>
    %66 = arith.cmpi slt, %64, %65 : vector<40x152xi32>
    %cst_35 = arith.constant 0.000000e+00 : f32
    %67 = vector.broadcast %cst_35 : f32 to vector<40x152xf32>
    %68 = arith.select %66, %61, %67 : vector<40x152xi1>, vector<40x152xf32>
    %cst_36 = arith.constant dense<0xFF800000> : vector<152xf32>
    %69 = vector.multi_reduction <maximumf>, %68, %cst_36 [0] : vector<40x152xf32> to vector<152xf32>
    %70 = vector.shape_cast %69 : vector<152xf32> to vector<1x152xf32>
    %71 = arith.truncf %70 : vector<1x152xf32> to vector<1x152xbf16>
    %c0_37 = arith.constant 0 : index
    %c0_38 = arith.constant 0 : index
    %72 = vector.load %arg13[%c0_37, %c0_38] : memref<152x512xbf16, #tpu.memory_space<vmem>>, vector<152x512xbf16>
    %cst_39 = arith.constant dense<0.000000e+00> : vector<1x512xf32>
    %73 = tpu.matmul %71, %72, %cst_39 {dimension_numbers = #tpu.dot_dimension_numbers<[1], [0], [0], [1], [0, 0, 1, 1], [], []>} : vector<1x152xbf16>, vector<152x512xbf16>, vector<1x512xf32> -> vector<1x512xf32>
    %c0_40 = arith.constant 0 : index
    %c0_41 = arith.constant 0 : index
    %74 = vector.load %arg14[%c0_40, %c0_41] : memref<1x512xf32, #tpu.memory_space<vmem>>, vector<1x512xf32>
    %75 = arith.addf %73, %74 : vector<1x512xf32>
    %c0_42 = arith.constant 0 : index
    %c0_43 = arith.constant 0 : index
    %76 = vector.load %arg15[%c0_42, %c0_43] : memref<1x512xf32, #tpu.memory_space<vmem>>, vector<1x512xf32>
    %77 = arith.mulf %75, %76 : vector<1x512xf32>
    %c0_44 = arith.constant 0 : index
    %c0_45 = arith.constant 0 : index
    %78 = vector.load %arg16[%c0_44, %c0_45] : memref<1x512xf32, #tpu.memory_space<vmem>>, vector<1x512xf32>
    %79 = arith.addf %77, %78 : vector<1x512xf32>
    %80 = arith.truncf %79 : vector<1x512xf32> to vector<1x512xbf16>
    %c0_46 = arith.constant 0 : index
    %c0_47 = arith.constant 0 : index
    %81 = vector.load %arg17[%c0_46, %c0_47] : memref<512x18xbf16, #tpu.memory_space<vmem>>, vector<512x18xbf16>
    %cst_48 = arith.constant dense<0.000000e+00> : vector<1x18xf32>
    %82 = tpu.matmul %80, %81, %cst_48 {dimension_numbers = #tpu.dot_dimension_numbers<[1], [0], [0], [1], [0, 0, 1, 1], [], []>} : vector<1x512xbf16>, vector<512x18xbf16>, vector<1x18xf32> -> vector<1x18xf32>
    %c0_49 = arith.constant 0 : index
    %c0_50 = arith.constant 0 : index
    %83 = vector.load %arg18[%c0_49, %c0_50] : memref<1x18xf32, #tpu.memory_space<vmem>>, vector<1x18xf32>
    %84 = arith.addf %82, %83 : vector<1x18xf32>
    %c0_51 = arith.constant 0 : index
    %c0_52 = arith.constant 0 : index
    %85 = vector.load %arg19[%c0_51, %c0_52] : memref<1x18xf32, #tpu.memory_space<vmem>>, vector<1x18xf32>
    %86 = arith.mulf %84, %85 : vector<1x18xf32>
    %c0_53 = arith.constant 0 : index
    %c0_54 = arith.constant 0 : index
    %87 = vector.load %arg20[%c0_53, %c0_54] : memref<1x18xf32, #tpu.memory_space<vmem>>, vector<1x18xf32>
    %88 = arith.addf %86, %87 : vector<1x18xf32>
    %89 = arith.negf %88 : vector<1x18xf32>
    %90 = math.exp %89 : vector<1x18xf32>
    %cst_55 = arith.constant 1.000000e+00 : f32
    %91 = vector.broadcast %cst_55 : f32 to vector<1x18xf32>
    %92 = arith.addf %91, %90 : vector<1x18xf32>
    %93 = arith.divf %91, %92 : vector<1x18xf32>
    %c0_56 = arith.constant 0 : index
    %c0_57 = arith.constant 0 : index
    %c0_58 = arith.constant 0 : index
    %94 = vector.load %arg21[%c0_56, %c0_57, %c0_58] : memref<1x1x18xf32, #tpu.memory_space<vmem>>, vector<1x1x18xf32>
    %95 = vector.shape_cast %94 : vector<1x1x18xf32> to vector<1x18xf32>
    %96 = vector.shape_cast %93 : vector<1x18xf32> to vector<1x1x18xf32>
    tpu.vector_store %arg21[%c0_56, %c0_57, %c0_58], %96 {strides = array<i32>} : memref<1x1x18xf32, #tpu.memory_space<vmem>>, vector<1x1x18xf32>,
    return
  }
  func.func @transform_0(%arg0: i32, %arg1: memref<2xi32, #tpu.memory_space<smem>>) -> (i32, i32, i32) {
    %c0_i32 = arith.constant 0 : i32
    %c0_i32_0 = arith.constant 0 : i32
    %c0_i32_1 = arith.constant 0 : i32
    return %arg0, %c0_i32, %c0_i32_0 : i32, i32, i32
  }
  func.func @transform_1(%arg0: i32, %arg1: memref<2xi32, #tpu.memory_space<smem>>) -> (i32, i32, i32) {
    %c0_i32 = arith.constant 0 : i32
    %c0_i32_0 = arith.constant 0 : i32
    %c0_i32_1 = arith.constant 0 : i32
    return %arg0, %c0_i32, %c0_i32_0 : i32, i32, i32
  }
  func.func @transform_2(%arg0: i32, %arg1: memref<2xi32, #tpu.memory_space<smem>>) -> (i32, i32, i32) {
    %c0_i32 = arith.constant 0 : i32
    %c0_i32_0 = arith.constant 0 : i32
    %c0_i32_1 = arith.constant 0 : i32
    return %arg0, %c0_i32, %c0_i32_0 : i32, i32, i32
  }
  func.func @transform_3(%arg0: i32, %arg1: memref<2xi32, #tpu.memory_space<smem>>) -> (i32, i32) {
    %c0_i32 = arith.constant 0 : i32
    %c0_i32_0 = arith.constant 0 : i32
    %c0_i32_1 = arith.constant 0 : i32
    return %c0_i32, %c0_i32_0 : i32, i32
  }
  func.func @transform_4(%arg0: i32, %arg1: memref<2xi32, #tpu.memory_space<smem>>) -> (i32, i32) {
    %c0_i32 = arith.constant 0 : i32
    %c0_i32_0 = arith.constant 0 : i32
    %c0_i32_1 = arith.constant 0 : i32
    return %c0_i32, %c0_i32_0 : i32, i32
  }
  func.func @transform_5(%arg0: i32, %arg1: memref<2xi32, #tpu.memory_space<smem>>) -> (i32, i32) {
    %c0_i32 = arith.constant 0 : i32
    %c0_i32_0 = arith.constant 0 : i32
    %c0_i32_1 = arith.constant 0 : i32
    return %c0_i32, %c0_i32_0 : i32, i32
  }
  func.func @transform_6(%arg0: i32, %arg1: memref<2xi32, #tpu.memory_space<smem>>) -> (i32, i32) {
    %c0_i32 = arith.constant 0 : i32
    %c0_i32_0 = arith.constant 0 : i32
    %c0_i32_1 = arith.constant 0 : i32
    return %c0_i32, %c0_i32_0 : i32, i32
  }
  func.func @transform_7(%arg0: i32, %arg1: memref<2xi32, #tpu.memory_space<smem>>) -> (i32, i32) {
    %c0_i32 = arith.constant 0 : i32
    %c0_i32_0 = arith.constant 0 : i32
    %c0_i32_1 = arith.constant 0 : i32
    return %c0_i32, %c0_i32_0 : i32, i32
  }
  func.func @transform_8(%arg0: i32, %arg1: memref<2xi32, #tpu.memory_space<smem>>) -> (i32, i32) {
    %c0_i32 = arith.constant 0 : i32
    %c0_i32_0 = arith.constant 0 : i32
    %c0_i32_1 = arith.constant 0 : i32
    return %c0_i32, %c0_i32_0 : i32, i32
  }
  func.func @transform_9(%arg0: i32, %arg1: memref<2xi32, #tpu.memory_space<smem>>) -> (i32, i32) {
    %c0_i32 = arith.constant 0 : i32
    %c0_i32_0 = arith.constant 0 : i32
    %c0_i32_1 = arith.constant 0 : i32
    return %c0_i32, %c0_i32_0 : i32, i32
  }
  func.func @transform_10(%arg0: i32, %arg1: memref<2xi32, #tpu.memory_space<smem>>) -> (i32, i32) {
    %c0_i32 = arith.constant 0 : i32
    %c0_i32_0 = arith.constant 0 : i32
    %c0_i32_1 = arith.constant 0 : i32
    return %c0_i32, %c0_i32_0 : i32, i32
  }
  func.func @transform_11(%arg0: i32, %arg1: memref<2xi32, #tpu.memory_space<smem>>) -> (i32, i32) {
    %c0_i32 = arith.constant 0 : i32
    %c0_i32_0 = arith.constant 0 : i32
    %c0_i32_1 = arith.constant 0 : i32
    return %c0_i32, %c0_i32_0 : i32, i32
  }
  func.func @transform_12(%arg0: i32, %arg1: memref<2xi32, #tpu.memory_space<smem>>) -> (i32, i32) {
    %c0_i32 = arith.constant 0 : i32
    %c0_i32_0 = arith.constant 0 : i32
    %c0_i32_1 = arith.constant 0 : i32
    return %c0_i32, %c0_i32_0 : i32, i32
  }
  func.func @transform_13(%arg0: i32, %arg1: memref<2xi32, #tpu.memory_space<smem>>) -> (i32, i32) {
    %c0_i32 = arith.constant 0 : i32
    %c0_i32_0 = arith.constant 0 : i32
    %c0_i32_1 = arith.constant 0 : i32
    return %c0_i32, %c0_i32_0 : i32, i32
  }
  func.func @transform_14(%arg0: i32, %arg1: memref<2xi32, #tpu.memory_space<smem>>) -> (i32, i32) {
    %c0_i32 = arith.constant 0 : i32
    %c0_i32_0 = arith.constant 0 : i32
    %c0_i32_1 = arith.constant 0 : i32
    return %c0_i32, %c0_i32_0 : i32, i32
  }
  func.func @transform_15(%arg0: i32, %arg1: memref<2xi32, #tpu.memory_space<smem>>) -> (i32, i32) {
    %c0_i32 = arith.constant 0 : i32
    %c0_i32_0 = arith.constant 0 : i32
    %c0_i32_1 = arith.constant 0 : i32
    return %c0_i32, %c0_i32_0 : i32, i32
  }
  func.func @transform_16(%arg0: i32, %arg1: memref<2xi32, #tpu.memory_space<smem>>) -> (i32, i32) {
    %c0_i32 = arith.constant 0 : i32
    %c0_i32_0 = arith.constant 0 : i32
    %c0_i32_1 = arith.constant 0 : i32
    return %c0_i32, %c0_i32_0 : i32, i32
  }
  func.func @transform_17(%arg0: i32, %arg1: memref<2xi32, #tpu.memory_space<smem>>) -> (i32, i32) {
    %c0_i32 = arith.constant 0 : i32
    %c0_i32_0 = arith.constant 0 : i32
    %c0_i32_1 = arith.constant 0 : i32
    return %c0_i32, %c0_i32_0 : i32, i32
  }
  func.func @transform_18(%arg0: i32, %arg1: memref<2xi32, #tpu.memory_space<smem>>) -> (i32, i32) {
    %c0_i32 = arith.constant 0 : i32
    %c0_i32_0 = arith.constant 0 : i32
    %c0_i32_1 = arith.constant 0 : i32
    return %c0_i32, %c0_i32_0 : i32, i32
  }
  func.func @transform_19(%arg0: i32, %arg1: memref<2xi32, #tpu.memory_space<smem>>) -> (i32, i32, i32) {
    %c0_i32 = arith.constant 0 : i32
    %c0_i32_0 = arith.constant 0 : i32
    %c0_i32_1 = arith.constant 0 : i32
    return %arg0, %c0_i32, %c0_i32_0 : i32, i32, i32
  }
}

</mosaic_0001>

<llo_original>
// kernel: graph_action_spotter.1
$region0: #{graph_action_spotter.1}
  #allocation0 [shape = 'u32[]', space=smem, size = 0x4, offset = 0x4, fixed_abs, tag = 'smem constant byte address 0x4 - core index']
  #allocation1 [shape = 'u32[144,128]{1,0:T(1,128)}', space=vmem, size = 0x12000, scoped, tag = 'internal scratch']
  #allocation2 [shape = 's32[1]{0}', space=sflag, size = 0x4, scoped, tag = 'scoped memory for graph_action_spotter.1']
  #allocation3 [shape = 'u8[512]{0}', space=smem, size = 0x200, scoped, tag = 'prefetched SMEM operand 0']
  %s0 = inlined_call_operand.vmem [shape: s32[2], index: 0, kind: input, shape index: {}]
  %s1 = inlined_call_operand.vmem [shape: bf16[2,40,40], index: 1, kind: input, shape index: {}]
  %s2 = inlined_call_operand.vmem [shape: f32[2,40,1], index: 2, kind: input, shape index: {}]
  %s3 = inlined_call_operand.vmem [shape: f32[2,40,8], index: 3, kind: input, shape index: {}]
  %s4 = inlined_call_operand.vmem [shape: bf16[8,16], index: 4, kind: input, shape index: {}]
  %s5 = inlined_call_operand.vmem [shape: f32[1,16], index: 5, kind: input, shape index: {}]
  %s6 = inlined_call_operand.vmem [shape: bf16[16,32], index: 6, kind: input, shape index: {}]
  %s7 = inlined_call_operand.vmem [shape: f32[1,32], index: 7, kind: input, shape index: {}]
  %s8 = inlined_call_operand.vmem [shape: bf16[32,64], index: 8, kind: input, shape index: {}]
  %s9 = inlined_call_operand.vmem [shape: f32[1,64], index: 9, kind: input, shape index: {}]
  %s10 = inlined_call_operand.vmem [shape: bf16[64,152], index: 10, kind: input, shape index: {}]
  %s11 = inlined_call_operand.vmem [shape: f32[1,152], index: 11, kind: input, shape index: {}]
  %s12 = inlined_call_operand.vmem [shape: bf16[152,512], index: 12, kind: input, shape index: {}]
  %s13 = inlined_call_operand.vmem [shape: f32[1,512], index: 13, kind: input, shape index: {}]
  %s14 = inlined_call_operand.vmem [shape: f32[1,512], index: 14, kind: input, shape index: {}]
  %s15 = inlined_call_operand.vmem [shape: f32[1,512], index: 15, kind: input, shape index: {}]
  %s16 = inlined_call_operand.vmem [shape: bf16[512,18], index: 16, kind: input, shape index: {}]
  %s17 = inlined_call_operand.vmem [shape: f32[1,18], index: 17, kind: input, shape index: {}]
  %s18 = inlined_call_operand.vmem [shape: f32[1,18], index: 18, kind: input, shape index: {}]
  %s19 = inlined_call_operand.vmem [shape: f32[1,18], index: 19, kind: input, shape index: {}]
  %s20 = inlined_call_operand.hbm [shape: f32[2,1,18], index: 20, kind: output, shape index: {}]
  %s21 = sld [smem:[#allocation0]]
  $region109: #{graph_action_spotter.1} parent=0
    _
  %s23 = ssub.s32 1, %s21
  %s24 = scalar_select 0, %s23, %s21
  %s25 = sshll.u32 %s0, 4
  %s26 = int_to_ptr.vmem [resolvable:$true] %s25
  %28 = dma.vmem_to_smem %s26, 16, [#allocation3], [#allocation2]
  %29 = dma.done [#allocation2], 16
  %30 = sfence
  $region1: #{graph_action_spotter.1} parent=0
    #allocation4 [shape = 'u8[1024]{0}', space=vmem, size = 0x400, scoped, tag = 'output window, operand 0']
    #allocation5 [shape = 's32[2]{0}', space=sflag, size = 0x8, scoped, tag = 'scoped memory for graph_action_spotter.1']
    %31 = vsyncpa [#allocation5], 0
    %s32 = scalar_lea.sflag [#allocation5], 1
    %33 = vsyncpa %s32, 0
    loop: start=0, step=1, limit=4
    $region2: #{graph_action_spotter.1} parent=1 // loop_pre_header
      _
    $region3: #{graph_action_spotter.1} parent=1 // loop_header
      %s35 = sphi 0, %s39
      %p36 = scmp.ge.s32.totalorder %s35, 4
      %s45 = sphi 0, %s47
      %s48 = sphi 0, %s45
      %s49 = sphi 0, %s48
      %s65 = sphi 0, %s49
      %s71 = sphi 0, %s73
      %s74 = sphi 0, %s71
      %s75 = sphi 0, %s74
      %s91 = sphi 0, %s75
      %s97 = sphi 0, %s99
      %s100 = sphi 0, %s97
      %s101 = sphi 0, %s100
      %s117 = sphi 0, %s101
      %s121 = sphi 0, %s121
      %s123 = sphi 0, %s121
      %s124 = sphi 0, %s123
      %s138 = sphi 0, %s124
      %s142 = sphi 0, %s142
      %s144 = sphi 0, %s142
      %s145 = sphi 0, %s144
      %s159 = sphi 0, %s145
      %s163 = sphi 0, %s163
      %s165 = sphi 0, %s163
      %s166 = sphi 0, %s165
      %s180 = sphi 0, %s166
      %s184 = sphi 0, %s184
      %s186 = sphi 0, %s184
      %s187 = sphi 0, %s186
      %s201 = sphi 0, %s187
      %s205 = sphi 0, %s205
      %s207 = sphi 0, %s205
      %s208 = sphi 0, %s207
      %s222 = sphi 0, %s208
      %s226 = sphi 0, %s226
      %s228 = sphi 0, %s226
      %s229 = sphi 0, %s228
      %s243 = sphi 0, %s229
      %s247 = sphi 0, %s247
      %s249 = sphi 0, %s247
      %s250 = sphi 0, %s249
      %s264 = sphi 0, %s250
      %s268 = sphi 0, %s268
      %s270 = sphi 0, %s268
      %s271 = sphi 0, %s270
      %s285 = sphi 0, %s271
      %s289 = sphi 0, %s289
      %s291 = sphi 0, %s289
      %s292 = sphi 0, %s291
      %s306 = sphi 0, %s292
      %s310 = sphi 0, %s310
      %s312 = sphi 0, %s310
      %s313 = sphi 0, %s312
      %s327 = sphi 0, %s313
      %s331 = sphi 0, %s331
      %s333 = sphi 0, %s331
      %s334 = sphi 0, %s333
      %s348 = sphi 0, %s334
      %s352 = sphi 0, %s352
      %s354 = sphi 0, %s352
      %s355 = sphi 0, %s354
      %s369 = sphi 0, %s355
      %s373 = sphi 0, %s373
      %s375 = sphi 0, %s373
      %s376 = sphi 0, %s375
      %s390 = sphi 0, %s376
      %s394 = sphi 0, %s394
      %s396 = sphi 0, %s394
      %s397 = sphi 0, %s396
      %s411 = sphi 0, %s397
      %s415 = sphi 0, %s415
      %s417 = sphi 0, %s415
      %s418 = sphi 0, %s417
      %s432 = sphi 0, %s418
      %s436 = sphi 0, %s436
      %s438 = sphi 0, %s436
      %s439 = sphi 0, %s438
      %s453 = sphi 0, %s439
      %s459 = sphi 0, %s461
      %s462 = sphi 0, %s459
      %s463 = sphi 0, %s462
      %s479 = sphi 0, %s463
    $region4: #{graph_action_spotter.1} parent=1 // loop_header_branch
      %38 = sbr.rel (%p36) target = $region8
    $region5: #{graph_action_spotter.1} parent=1 // loop_body
      %s40 = ssub.s32 %s35, 1
      %s41 = ssub.s32 %s35, 2
      %s42 = sadd.s32 %s35, 1
      %s43 = ssub.s32 %s35, %s42
      %p44 = scmp.eq.s32.totalorder %s43, 0
      %s46 = sadd.s32 %s45, 1
      %s47 = scalar_select %p44, %s45, %s46
      %p50 = pneg %p44
      %p51 = scmp.eq.s32.totalorder %s35, 1
      %p52 = por %p50, %p51
      %p53 = scmp.ne.s32.totalorder %s45, %s48
      %p54 = scmp.eq.s32.totalorder %s35, 0
      %p55 = por %p53, %p54
      %p56 = scmp.ne.s32.totalorder %s45, %s48
      %p57 = scmp.eq.s32.totalorder %s40, 1
      %p58 = por %p56, %p57
      %p59 = scmp.ne.s32.totalorder %s48, %s49
      %p60 = scmp.eq.s32.totalorder %s40, 0
      %p61 = por %p59, %p60
      %p62 = scmp.ne.s32.totalorder %s48, %s49
      %p63 = scmp.eq.s32.totalorder %s41, 1
      %p64 = por %p62, %p63
      %p66 = scmp.ne.s32.totalorder %s49, %s65
      %p67 = scmp.eq.s32.totalorder %s41, 0
      %p68 = por %p66, %p67
      %s69 = ssub.s32 %s35, %s42
      %p70 = scmp.eq.s32.totalorder %s69, 0
      %s72 = sadd.s32 %s71, 1
      %s73 = scalar_select %p70, %s71, %s72
      %p76 = pneg %p70
      %p77 = scmp.eq.s32.totalorder %s35, 1
      %p78 = por %p76, %p77
      %p79 = scmp.ne.s32.totalorder %s71, %s74
      %p80 = scmp.eq.s32.totalorder %s35, 0
      %p81 = por %p79, %p80
      %p82 = scmp.ne.s32.totalorder %s71, %s74
      %p83 = scmp.eq.s32.totalorder %s40, 1
      %p84 = por %p82, %p83
      %p85 = scmp.ne.s32.totalorder %s74, %s75
      %p86 = scmp.eq.s32.totalorder %s40, 0
      %p87 = por %p85, %p86
      %p88 = scmp.ne.s32.totalorder %s74, %s75
      %p89 = scmp.eq.s32.totalorder %s41, 1
      %p90 = por %p88, %p89
      %p92 = scmp.ne.s32.totalorder %s75, %s91
      %p93 = scmp.eq.s32.totalorder %s41, 0
      %p94 = por %p92, %p93
      %s95 = ssub.s32 %s35, %s42
      %p96 = scmp.eq.s32.totalorder %s95, 0
      %s98 = sadd.s32 %s97, 1
      %s99 = scalar_select %p96, %s97, %s98
      %p102 = pneg %p96
      %p103 = scmp.eq.s32.totalorder %s35, 1
      %p104 = por %p102, %p103
      %p105 = scmp.ne.s32.totalorder %s97, %s100
      %p106 = scmp.eq.s32.totalorder %s35, 0
      %p107 = por %p105, %p106
      %p108 = scmp.ne.s32.totalorder %s97, %s100
      %p109 = scmp.eq.s32.totalorder %s40, 1
      %p110 = por %p108, %p109
      %p111 = scmp.ne.s32.totalorder %s100, %s101
      %p112 = scmp.eq.s32.totalorder %s40, 0
      %p113 = por %p111, %p112
      %p114 = scmp.ne.s32.totalorder %s100, %s101
      %p115 = scmp.eq.s32.totalorder %s41, 1
      %p116 = por %p114, %p115
      %p118 = scmp.ne.s32.totalorder %s101, %s117
      %p119 = scmp.eq.s32.totalorder %s41, 0
      %p120 = por %p118, %p119
      %s122 = sadd.s32 %s121, 1
      %p125 = scmp.eq.s32.totalorder %s35, 1
      %p126 = scmp.ne.s32.totalorder %s121, %s123
      %p127 = scmp.eq.s32.totalorder %s35, 0
      %p128 = por %p126, %p127
      %p129 = scmp.ne.s32.totalorder %s121, %s123
      %p130 = scmp.eq.s32.totalorder %s40, 1
      %p131 = por %p129, %p130
      %p132 = scmp.ne.s32.totalorder %s123, %s124
      %p133 = scmp.eq.s32.totalorder %s40, 0
      %p134 = por %p132, %p133
      %p135 = scmp.ne.s32.totalorder %s123, %s124
      %p136 = scmp.eq.s32.totalorder %s41, 1
      %p137 = por %p135, %p136
      %p139 = scmp.ne.s32.totalorder %s124, %s138
      %p140 = scmp.eq.s32.totalorder %s41, 0
      %p141 = por %p139, %p140
      %s143 = sadd.s32 %s142, 1
      %p146 = scmp.eq.s32.totalorder %s35, 1
      %p147 = scmp.ne.s32.totalorder %s142, %s144
      %p148 = scmp.eq.s32.totalorder %s35, 0
      %p149 = por %p147, %p148
      %p150 = scmp.ne.s32.totalorder %s142, %s144
      %p151 = scmp.eq.s32.totalorder %s40, 1
      %p152 = por %p150, %p151
      %p153 = scmp.ne.s32.totalorder %s144, %s145
      %p154 = scmp.eq.s32.totalorder %s40, 0
      %p155 = por %p153, %p154
      %p156 = scmp.ne.s32.totalorder %s144, %s145
      %p157 = scmp.eq.s32.totalorder %s41, 1
      %p158 = por %p156, %p157
      %p160 = scmp.ne.s32.totalorder %s145, %s159
      %p161 = scmp.eq.s32.totalorder %s41, 0
      %p162 = por %p160, %p161
      %s164 = sadd.s32 %s163, 1
      %p167 = scmp.eq.s32.totalorder %s35, 1
      %p168 = scmp.ne.s32.totalorder %s163, %s165
      %p169 = scmp.eq.s32.totalorder %s35, 0
      %p170 = por %p168, %p169
      %p171 = scmp.ne.s32.totalorder %s163, %s165
      %p172 = scmp.eq.s32.totalorder %s40, 1
      %p173 = por %p171, %p172
      %p174 = scmp.ne.s32.totalorder %s165, %s166
      %p175 = scmp.eq.s32.totalorder %s40, 0
      %p176 = por %p174, %p175
      %p177 = scmp.ne.s32.totalorder %s165, %s166
      %p178 = scmp.eq.s32.totalorder %s41, 1
      %p179 = por %p177, %p178
      %p181 = scmp.ne.s32.totalorder %s166, %s180
      %p182 = scmp.eq.s32.totalorder %s41, 0
      %p183 = por %p181, %p182
      %s185 = sadd.s32 %s184, 1
      %p188 = scmp.eq.s32.totalorder %s35, 1
      %p189 = scmp.ne.s32.totalorder %s184, %s186
      %p190 = scmp.eq.s32.totalorder %s35, 0
      %p191 = por %p189, %p190
      %p192 = scmp.ne.s32.totalorder %s184, %s186
      %p193 = scmp.eq.s32.totalorder %s40, 1
      %p194 = por %p192, %p193
      %p195 = scmp.ne.s32.totalorder %s186, %s187
      %p196 = scmp.eq.s32.totalorder %s40, 0
      %p197 = por %p195, %p196
      %p198 = scmp.ne.s32.totalorder %s186, %s187
      %p199 = scmp.eq.s32.totalorder %s41, 1
      %p200 = por %p198, %p199
      %p202 = scmp.ne.s32.totalorder %s187, %s201
      %p203 = scmp.eq.s32.totalorder %s41, 0
      %p204 = por %p202, %p203
      %s206 = sadd.s32 %s205, 1
      %p209 = scmp.eq.s32.totalorder %s35, 1
      %p210 = scmp.ne.s32.totalorder %s205, %s207
      %p211 = scmp.eq.s32.totalorder %s35, 0
      %p212 = por %p210, %p211
      %p213 = scmp.ne.s32.totalorder %s205, %s207
      %p214 = scmp.eq.s32.totalorder %s40, 1
      %p215 = por %p213, %p214
      %p216 = scmp.ne.s32.totalorder %s207, %s208
      %p217 = scmp.eq.s32.totalorder %s40, 0
      %p218 = por %p216, %p217
      %p219 = scmp.ne.s32.totalorder %s207, %s208
      %p220 = scmp.eq.s32.totalorder %s41, 1
      %p221 = por %p219, %p220
      %p223 = scmp.ne.s32.totalorder %s208, %s222
      %p224 = scmp.eq.s32.totalorder %s41, 0
      %p225 = por %p223, %p224
      %s227 = sadd.s32 %s226, 1
      %p230 = scmp.eq.s32.totalorder %s35, 1
      %p231 = scmp.ne.s32.totalorder %s226, %s228
      %p232 = scmp.eq.s32.totalorder %s35, 0
      %p233 = por %p231, %p232
      %p234 = scmp.ne.s32.totalorder %s226, %s228
      %p235 = scmp.eq.s32.totalorder %s40, 1
      %p236 = por %p234, %p235
      %p237 = scmp.ne.s32.totalorder %s228, %s229
      %p238 = scmp.eq.s32.totalorder %s40, 0
      %p239 = por %p237, %p238
      %p240 = scmp.ne.s32.totalorder %s228, %s229
      %p241 = scmp.eq.s32.totalorder %s41, 1
      %p242 = por %p240, %p241
      %p244 = scmp.ne.s32.totalorder %s229, %s243
      %p245 = scmp.eq.s32.totalorder %s41, 0
      %p246 = por %p244, %p245
      %s248 = sadd.s32 %s247, 1
      %p251 = scmp.eq.s32.totalorder %s35, 1
      %p252 = scmp.ne.s32.totalorder %s247, %s249
      %p253 = scmp.eq.s32.totalorder %s35, 0
      %p254 = por %p252, %p253
      %p255 = scmp.ne.s32.totalorder %s247, %s249
      %p256 = scmp.eq.s32.totalorder %s40, 1
      %p257 = por %p255, %p256
      %p258 = scmp.ne.s32.totalorder %s249, %s250
      %p259 = scmp.eq.s32.totalorder %s40, 0
      %p260 = por %p258, %p259
      %p261 = scmp.ne.s32.totalorder %s249, %s250
      %p262 = scmp.eq.s32.totalorder %s41, 1
      %p263 = por %p261, %p262
      %p265 = scmp.ne.s32.totalorder %s250, %s264
      %p266 = scmp.eq.s32.totalorder %s41, 0
      %p267 = por %p265, %p266
      %s269 = sadd.s32 %s268, 1
      %p272 = scmp.eq.s32.totalorder %s35, 1
      %p273 = scmp.ne.s32.totalorder %s268, %s270
      %p274 = scmp.eq.s32.totalorder %s35, 0
      %p275 = por %p273, %p274
      %p276 = scmp.ne.s32.totalorder %s268, %s270
      %p277 = scmp.eq.s32.totalorder %s40, 1
      %p278 = por %p276, %p277
      %p279 = scmp.ne.s32.totalorder %s270, %s271
      %p280 = scmp.eq.s32.totalorder %s40, 0
      %p281 = por %p279, %p280
      %p282 = scmp.ne.s32.totalorder %s270, %s271
      %p283 = scmp.eq.s32.totalorder %s41, 1
      %p284 = por %p282, %p283
      %p286 = scmp.ne.s32.totalorder %s271, %s285
      %p287 = scmp.eq.s32.totalorder %s41, 0
      %p288 = por %p286, %p287
      %s290 = sadd.s32 %s289, 1
      %p293 = scmp.eq.s32.totalorder %s35, 1
      %p294 = scmp.ne.s32.totalorder %s289, %s291
      %p295 = scmp.eq.s32.totalorder %s35, 0
      %p296 = por %p294, %p295
      %p297 = scmp.ne.s32.totalorder %s289, %s291
      %p298 = scmp.eq.s32.totalorder %s40, 1
      %p299 = por %p297, %p298
      %p300 = scmp.ne.s32.totalorder %s291, %s292
      %p301 = scmp.eq.s32.totalorder %s40, 0
      %p302 = por %p300, %p301
      %p303 = scmp.ne.s32.totalorder %s291, %s292
      %p304 = scmp.eq.s32.totalorder %s41, 1
      %p305 = por %p303, %p304
      %p307 = scmp.ne.s32.totalorder %s292, %s306
      %p308 = scmp.eq.s32.totalorder %s41, 0
      %p309 = por %p307, %p308
      %s311 = sadd.s32 %s310, 1
      %p314 = scmp.eq.s32.totalorder %s35, 1
      %p315 = scmp.ne.s32.totalorder %s310, %s312
      %p316 = scmp.eq.s32.totalorder %s35, 0
      %p317 = por %p315, %p316
      %p318 = scmp.ne.s32.totalorder %s310, %s312
      %p319 = scmp.eq.s32.totalorder %s40, 1
      %p320 = por %p318, %p319
      %p321 = scmp.ne.s32.totalorder %s312, %s313
      %p322 = scmp.eq.s32.totalorder %s40, 0
      %p323 = por %p321, %p322
      %p324 = scmp.ne.s32.totalorder %s312, %s313
      %p325 = scmp.eq.s32.totalorder %s41, 1
      %p326 = por %p324, %p325
      %p328 = scmp.ne.s32.totalorder %s313, %s327
      %p329 = scmp.eq.s32.totalorder %s41, 0
      %p330 = por %p328, %p329
      %s332 = sadd.s32 %s331, 1
      %p335 = scmp.eq.s32.totalorder %s35, 1
      %p336 = scmp.ne.s32.totalorder %s331, %s333
      %p337 = scmp.eq.s32.totalorder %s35, 0
      %p338 = por %p336, %p337
      %p339 = scmp.ne.s32.totalorder %s331, %s333
      %p340 = scmp.eq.s32.totalorder %s40, 1
      %p341 = por %p339, %p340
      %p342 = scmp.ne.s32.totalorder %s333, %s334
      %p343 = scmp.eq.s32.totalorder %s40, 0
      %p344 = por %p342, %p343
      %p345 = scmp.ne.s32.totalorder %s333, %s334
      %p346 = scmp.eq.s32.totalorder %s41, 1
      %p347 = por %p345, %p346
      %p349 = scmp.ne.s32.totalorder %s334, %s348
      %p350 = scmp.eq.s32.totalorder %s41, 0
      %p351 = por %p349, %p350
      %s353 = sadd.s32 %s352, 1
      %p356 = scmp.eq.s32.totalorder %s35, 1
      %p357 = scmp.ne.s32.totalorder %s352, %s354
      %p358 = scmp.eq.s32.totalorder %s35, 0
      %p359 = por %p357, %p358
      %p360 = scmp.ne.s32.totalorder %s352, %s354
      %p361 = scmp.eq.s32.totalorder %s40, 1
      %p362 = por %p360, %p361
      %p363 = scmp.ne.s32.totalorder %s354, %s355
      %p364 = scmp.eq.s32.totalorder %s40, 0
      %p365 = por %p363, %p364
      %p366 = scmp.ne.s32.totalorder %s354, %s355
      %p367 = scmp.eq.s32.totalorder %s41, 1
      %p368 = por %p366, %p367
      %p370 = scmp.ne.s32.totalorder %s355, %s369
      %p371 = scmp.eq.s32.totalorder %s41, 0
      %p372 = por %p370, %p371
      %s374 = sadd.s32 %s373, 1
      %p377 = scmp.eq.s32.totalorder %s35, 1
      %p378 = scmp.ne.s32.totalorder %s373, %s375
      %p379 = scmp.eq.s32.totalorder %s35, 0
      %p380 = por %p378, %p379
      %p381 = scmp.ne.s32.totalorder %s373, %s375
      %p382 = scmp.eq.s32.totalorder %s40, 1
      %p383 = por %p381, %p382
      %p384 = scmp.ne.s32.totalorder %s375, %s376
      %p385 = scmp.eq.s32.totalorder %s40, 0
      %p386 = por %p384, %p385
      %p387 = scmp.ne.s32.totalorder %s375, %s376
      %p388 = scmp.eq.s32.totalorder %s41, 1
      %p389 = por %p387, %p388
      %p391 = scmp.ne.s32.totalorder %s376, %s390
      %p392 = scmp.eq.s32.totalorder %s41, 0
      %p393 = por %p391, %p392
      %s395 = sadd.s32 %s394, 1
      %p398 = scmp.eq.s32.totalorder %s35, 1
      %p399 = scmp.ne.s32.totalorder %s394, %s396
      %p400 = scmp.eq.s32.totalorder %s35, 0
      %p401 = por %p399, %p400
      %p402 = scmp.ne.s32.totalorder %s394, %s396
      %p403 = scmp.eq.s32.totalorder %s40, 1
      %p404 = por %p402, %p403
      %p405 = scmp.ne.s32.totalorder %s396, %s397
      %p406 = scmp.eq.s32.totalorder %s40, 0
      %p407 = por %p405, %p406
      %p408 = scmp.ne.s32.totalorder %s396, %s397
      %p409 = scmp.eq.s32.totalorder %s41, 1
      %p410 = por %p408, %p409
      %p412 = scmp.ne.s32.totalorder %s397, %s411
      %p413 = scmp.eq.s32.totalorder %s41, 0
      %p414 = por %p412, %p413
      %s416 = sadd.s32 %s415, 1
      %p419 = scmp.eq.s32.totalorder %s35, 1
      %p420 = scmp.ne.s32.totalorder %s415, %s417
      %p421 = scmp.eq.s32.totalorder %s35, 0
      %p422 = por %p420, %p421
      %p423 = scmp.ne.s32.totalorder %s415, %s417
      %p424 = scmp.eq.s32.totalorder %s40, 1
      %p425 = por %p423, %p424
      %p426 = scmp.ne.s32.totalorder %s417, %s418
      %p427 = scmp.eq.s32.totalorder %s40, 0
      %p428 = por %p426, %p427
      %p429 = scmp.ne.s32.totalorder %s417, %s418
      %p430 = scmp.eq.s32.totalorder %s41, 1
      %p431 = por %p429, %p430
      %p433 = scmp.ne.s32.totalorder %s418, %s432
      %p434 = scmp.eq.s32.totalorder %s41, 0
      %p435 = por %p433, %p434
      %s437 = sadd.s32 %s436, 1
      %p440 = scmp.eq.s32.totalorder %s35, 1
      %p441 = scmp.ne.s32.totalorder %s436, %s438
      %p442 = scmp.eq.s32.totalorder %s35, 0
      %p443 = por %p441, %p442
      %p444 = scmp.ne.s32.totalorder %s436, %s438
      %p445 = scmp.eq.s32.totalorder %s40, 1
      %p446 = por %p444, %p445
      %p447 = scmp.ne.s32.totalorder %s438, %s439
      %p448 = scmp.eq.s32.totalorder %s40, 0
      %p449 = por %p447, %p448
      %p450 = scmp.ne.s32.totalorder %s438, %s439
      %p451 = scmp.eq.s32.totalorder %s41, 1
      %p452 = por %p450, %p451
      %p454 = scmp.ne.s32.totalorder %s439, %s453
      %p455 = scmp.eq.s32.totalorder %s41, 0
      %p456 = por %p454, %p455
      %s457 = ssub.s32 %s35, %s42
      %p458 = scmp.eq.s32.totalorder %s457, 0
      %s460 = sadd.s32 %s459, 1
      %s461 = scalar_select %p458, %s459, %s460
      %p464 = pneg %p458
      %p465 = scmp.eq.s32.totalorder %s35, 1
      %p466 = por %p464, %p465
      %p467 = scmp.ne.s32.totalorder %s459, %s462
      %p468 = scmp.eq.s32.totalorder %s35, 0
      %p469 = por %p467, %p468
      %p470 = scmp.ne.s32.totalorder %s459, %s462
      %p471 = scmp.eq.s32.totalorder %s40, 1
      %p472 = por %p470, %p471
      %p473 = scmp.ne.s32.totalorder %s462, %s463
      %p474 = scmp.eq.s32.totalorder %s40, 0
      %p475 = por %p473, %p474
      %p476 = scmp.ne.s32.totalorder %s462, %s463
      %p477 = scmp.eq.s32.totalorder %s41, 1
      %p478 = por %p476, %p477
      %p480 = scmp.ne.s32.totalorder %s463, %s479
      %p481 = scmp.eq.s32.totalorder %s41, 0
      %p482 = por %p480, %p481
      %p483 = scmp.le.s32.totalorder 1, %s35
      %p484 = scmp.lt.s32.totalorder %s35, 3
      %p485 = pnand %p483, %p484
      %p486 = pneg %p485
      // Predicated region
      $region9: #{graph_action_spotter.1} parent=5 // pred_check
        _
      $region10: #{graph_action_spotter.1} parent=5 // pred_check_branch
        %488 = sbr.rel (%p485) target = $region12
      $region11: #{graph_action_spotter.1} parent=5 // pred_region
        %s489 = ssub.s32 %s35, 1
        // Predicated region
        $region13: #{graph_action_spotter.1} parent=11 // pred_check
          %p490 = pneg %p134
        $region14: #{graph_action_spotter.1} parent=11 // pred_check_branch
          %492 = sbr.rel (%p490) target = $region16
        $region15: #{graph_action_spotter.1} parent=11 // pred_region
          _
        $region16: #{graph_action_spotter.1} parent=11 // pred_fallthru
          _
        // Predicated region
        $region17: #{graph_action_spotter.1} parent=11 // pred_check
          %p493 = pneg %p155
        $region18: #{graph_action_spotter.1} parent=11 // pred_check_branch
          %495 = sbr.rel (%p493) target = $region20
        $region19: #{graph_action_spotter.1} parent=11 // pred_region
          _
        $region20: #{graph_action_spotter.1} parent=11 // pred_fallthru
          _
        // Predicated region
        $region21: #{graph_action_spotter.1} parent=11 // pred_check
          %p496 = pneg %p176
        $region22: #{graph_action_spotter.1} parent=11 // pred_check_branch
          %498 = sbr.rel (%p496) target = $region24
        $region23: #{graph_action_spotter.1} parent=11 // pred_region
          _
        $region24: #{graph_action_spotter.1} parent=11 // pred_fallthru
          _
        // Predicated region
        $region25: #{graph_action_spotter.1} parent=11 // pred_check
          %p499 = pneg %p197
        $region26: #{graph_action_spotter.1} parent=11 // pred_check_branch
          %501 = sbr.rel (%p499) target = $region28
        $region27: #{graph_action_spotter.1} parent=11 // pred_region
          _
        $region28: #{graph_action_spotter.1} parent=11 // pred_fallthru
          _
        // Predicated region
        $region29: #{graph_action_spotter.1} parent=11 // pred_check
          %p502 = pneg %p218
        $region30: #{graph_action_spotter.1} parent=11 // pred_check_branch
          %504 = sbr.rel (%p502) target = $region32
        $region31: #{graph_action_spotter.1} parent=11 // pred_region
          _
        $region32: #{graph_action_spotter.1} parent=11 // pred_fallthru
          _
        // Predicated region
        $region33: #{graph_action_spotter.1} parent=11 // pred_check
          %p505 = pneg %p239
        $region34: #{graph_action_spotter.1} parent=11 // pred_check_branch
          %507 = sbr.rel (%p505) target = $region36
        $region35: #{graph_action_spotter.1} parent=11 // pred_region
          _
        $region36: #{graph_action_spotter.1} parent=11 // pred_fallthru
          _
        // Predicated region
        $region37: #{graph_action_spotter.1} parent=11 // pred_check
          %p508 = pneg %p260
        $region38: #{graph_action_spotter.1} parent=11 // pred_check_branch
          %510 = sbr.rel (%p508) target = $region40
        $region39: #{graph_action_spotter.1} parent=11 // pred_region
          _
        $region40: #{graph_action_spotter.1} parent=11 // pred_fallthru
          _
        // Predicated region
        $region41: #{graph_action_spotter.1} parent=11 // pred_check
          %p511 = pneg %p281
        $region42: #{graph_action_spotter.1} parent=11 // pred_check_branch
          %513 = sbr.rel (%p511) target = $region44
        $region43: #{graph_action_spotter.1} parent=11 // pred_region
          _
        $region44: #{graph_action_spotter.1} parent=11 // pred_fallthru
          _
        // Predicated region
        $region45: #{graph_action_spotter.1} parent=11 // pred_check
          %p514 = pneg %p302
        $region46: #{graph_action_spotter.1} parent=11 // pred_check_branch
          %516 = sbr.rel (%p514) target = $region48
        $region47: #{graph_action_spotter.1} parent=11 // pred_region
          _
        $region48: #{graph_action_spotter.1} parent=11 // pred_fallthru
          _
        // Predicated region
        $region49: #{graph_action_spotter.1} parent=11 // pred_check
          %p517 = pneg %p323
        $region50: #{graph_action_spotter.1} parent=11 // pred_check_branch
          %519 = sbr.rel (%p517) target = $region52
        $region51: #{graph_action_spotter.1} parent=11 // pred_region
          _
        $region52: #{graph_action_spotter.1} parent=11 // pred_fallthru
          _
        // Predicated region
        $region53: #{graph_action_spotter.1} parent=11 // pred_check
          %p520 = pneg %p344
        $region54: #{graph_action_spotter.1} parent=11 // pred_check_branch
          %522 = sbr.rel (%p520) target = $region56
        $region55: #{graph_action_spotter.1} parent=11 // pred_region
          _
        $region56: #{graph_action_spotter.1} parent=11 // pred_fallthru
          _
        // Predicated region
        $region57: #{graph_action_spotter.1} parent=11 // pred_check
          %p523 = pneg %p365
        $region58: #{graph_action_spotter.1} parent=11 // pred_check_branch
          %525 = sbr.rel (%p523) target = $region60
        $region59: #{graph_action_spotter.1} parent=11 // pred_region
          _
        $region60: #{graph_action_spotter.1} parent=11 // pred_fallthru
          _
        // Predicated region
        $region61: #{graph_action_spotter.1} parent=11 // pred_check
          %p526 = pneg %p386
        $region62: #{graph_action_spotter.1} parent=11 // pred_check_branch
          %528 = sbr.rel (%p526) target = $region64
        $region63: #{graph_action_spotter.1} parent=11 // pred_region
          _
        $region64: #{graph_action_spotter.1} parent=11 // pred_fallthru
          _
        // Predicated region
        $region65: #{graph_action_spotter.1} parent=11 // pred_check
          %p529 = pneg %p407
        $region66: #{graph_action_spotter.1} parent=11 // pred_check_branch
          %531 = sbr.rel (%p529) target = $region68
        $region67: #{graph_action_spotter.1} parent=11 // pred_region
          _
        $region68: #{graph_action_spotter.1} parent=11 // pred_fallthru
          _
        // Predicated region
        $region69: #{graph_action_spotter.1} parent=11 // pred_check
          %p532 = pneg %p428
        $region70: #{graph_action_spotter.1} parent=11 // pred_check_branch
          %534 = sbr.rel (%p532) target = $region72
        $region71: #{graph_action_spotter.1} parent=11 // pred_region
          _
        $region72: #{graph_action_spotter.1} parent=11 // pred_fallthru
          _
        // Predicated region
        $region73: #{graph_action_spotter.1} parent=11 // pred_check
          %p535 = pneg %p449
        $region74: #{graph_action_spotter.1} parent=11 // pred_check_branch
          %537 = sbr.rel (%p535) target = $region76
        $region75: #{graph_action_spotter.1} parent=11 // pred_region
          _
        $region76: #{graph_action_spotter.1} parent=11 // pred_fallthru
          _
      $region12: #{graph_action_spotter.1} parent=5 // pred_fallthru
        _
      %p538 = scmp.lt.s32.totalorder %s35, 2
      // Predicated region
      $region77: #{graph_action_spotter.1} parent=5 // pred_check
        %p539 = pneg %p538
      $region78: #{graph_action_spotter.1} parent=5 // pred_check_branch
        %541 = sbr.rel (%p539) target = $region80
      $region79: #{graph_action_spotter.1} parent=5 // pred_region
        // Predicated region
        $region81: #{graph_action_spotter.1} parent=79 // pred_check
          %p542 = pneg %p55
        $region82: #{graph_action_spotter.1} parent=79 // pred_check_branch
          %544 = sbr.rel (%p542) target = $region84
        $region83: #{graph_action_spotter.1} parent=79 // pred_region
          %p545 = scmp.lt.s32.totalorder %s35, 1
          %s546 = scalar_select %p545, %s35, 1
          %s547 = smul.addr %s546, 5
          %s548 = smul.addr %s547, 4
          %s549 = scalar_lea.vmem %s1, %s548
        $region84: #{graph_action_spotter.1} parent=79 // pred_fallthru
          _
        // Predicated region
        $region85: #{graph_action_spotter.1} parent=79 // pred_check
          %p550 = pneg %p81
        $region86: #{graph_action_spotter.1} parent=79 // pred_check_branch
          %552 = sbr.rel (%p550) target = $region88
        $region87: #{graph_action_spotter.1} parent=79 // pred_region
          %p553 = scmp.lt.s32.totalorder %s35, 1
          %s554 = scalar_select %p553, %s35, 1
          %s555 = smul.addr %s554, 5
          %s556 = smul.addr %s555, 8
          %s557 = scalar_lea.vmem %s2, %s556
        $region88: #{graph_action_spotter.1} parent=79 // pred_fallthru
          _
        // Predicated region
        $region89: #{graph_action_spotter.1} parent=79 // pred_check
          %p558 = pneg %p107
        $region90: #{graph_action_spotter.1} parent=79 // pred_check_branch
          %560 = sbr.rel (%p558) target = $region92
        $region91: #{graph_action_spotter.1} parent=79 // pred_region
          %p561 = scmp.lt.s32.totalorder %s35, 1
          %s562 = scalar_select %p561, %s35, 1
          %s563 = smul.addr %s562, 5
          %s564 = smul.addr %s563, 8
          %s565 = scalar_lea.vmem %s3, %s564
        $region92: #{graph_action_spotter.1} parent=79 // pred_fallthru
          _
      $region80: #{graph_action_spotter.1} parent=5 // pred_fallthru
        _
      %p566 = scmp.le.s32.totalorder 1, %s35
      %p567 = scmp.lt.s32.totalorder %s35, 3
      %p568 = pnand %p566, %p567
      %p569 = pneg %p568
      // Predicated region
      $region93: #{graph_action_spotter.1} parent=5 // pred_check
        _
      $region94: #{graph_action_spotter.1} parent=5 // pred_check_branch
        %571 = sbr.rel (%p568) target = $region96
      $region95: #{graph_action_spotter.1} parent=5 // pred_region
        %s572 = ssub.s32 %s35, 1
        %p573 = scmp.lt.s32.totalorder %s40, 1
        %s574 = scalar_select %p573, %s40, 1
        %s575 = smul.addr %s574, 5
        %s576 = smul.addr %s575, 4
        %s577 = scalar_lea.vmem %s1, %s576
        %p578 = pneg %p61
        %p579 = pneg %p58
        %p580 = scmp.lt.s32.totalorder %s40, 1
        %s581 = scalar_select %p580, %s40, 1
        %s582 = smul.addr %s581, 5
        %s583 = smul.addr %s582, 8
        %s584 = scalar_lea.vmem %s2, %s583
        %p585 = pneg %p87
        %p586 = pneg %p84
        %p587 = scmp.lt.s32.totalorder %s40, 1
        %s588 = scalar_select %p587, %s40, 1
        %s589 = smul.addr %s588, 5
        %s590 = smul.addr %s589, 8
        %s591 = scalar_lea.vmem %s3, %s590
        %p592 = pneg %p113
        %p593 = pneg %p110
        %p594 = pneg %p134
        %p595 = pneg %p131
        %p596 = pneg %p155
        %p597 = pneg %p152
        %p598 = pneg %p176
        %p599 = pneg %p173
        %p600 = pneg %p197
        %p601 = pneg %p194
        %p602 = pneg %p218
        %p603 = pneg %p215
        %p604 = pneg %p239
        %p605 = pneg %p236
        %p606 = pneg %p260
        %p607 = pneg %p257
        %p608 = pneg %p281
        %p609 = pneg %p278
        %p610 = pneg %p302
        %p611 = pneg %p299
        %p612 = pneg %p323
        %p613 = pneg %p320
        %p614 = pneg %p344
        %p615 = pneg %p341
        %p616 = pneg %p365
        %p617 = pneg %p362
        %p618 = pneg %p386
        %p619 = pneg %p383
        %p620 = pneg %p407
        %p621 = pneg %p404
        %p622 = pneg %p428
        %p623 = pneg %p425
        %p624 = pneg %p449
        %p625 = pneg %p446
        %p626 = pneg %p475
        %p627 = pneg %p472
        %s628 = sand.u32 %s462, 1
        %s629 = scalar_lea.sflag [#allocation5], %s628
        %s630 = sand.u32 %s462, 1
        %s631 = scalar_lea.vmem [#allocation4], %s630
        %p632 = scmp.lt.s32.totalorder %s40, 1
        %s633 = scalar_select %p632, %s40, 1
        %s634 = smul.addr %s633, 5
        %s635 = smul.addr %s634, 4
        %s636 = scalar_lea.vmem %s1, %s635
        %p637 = scmp.lt.s32.totalorder %s40, 1
        %s638 = scalar_select %p637, %s40, 1
        %s639 = smul.addr %s638, 5
        %s640 = smul.addr %s639, 8
        %s641 = scalar_lea.vmem %s2, %s640
        %p642 = scmp.lt.s32.totalorder %s40, 1
        %s643 = scalar_select %p642, %s40, 1
        %s644 = smul.addr %s643, 5
        %s645 = smul.addr %s644, 8
        %s646 = scalar_lea.vmem %s3, %s645
        %v648 = vld [vmem:[%s636] sm:$0xf]
        %v649 = vld [vmem:[%s636 + $0x4] sm:$0xf]
        %v650 = vld [vmem:[%s636 + $0x8] sm:$0xf]
        %v651 = vld [vmem:[%s636 + $0xc] sm:$0xf]
        %v652 = vld [vmem:[%s636 + $0x10] sm:$0xf]
        %v653 = vld [vmem:[%s641] sm:$0xff]
        %v654 = vld [vmem:[%s641 + $0x8] sm:$0xff]
        %v655 = vld [vmem:[%s641 + $0x10] sm:$0xff]
        %v656 = vld [vmem:[%s641 + $0x18] sm:$0xff]
        %v657 = vld [vmem:[%s641 + $0x20] sm:$0xff]
        %v658 = vld [vmem:[%s646] sm:$0xff]
        %v659 = vld [vmem:[%s646 + $0x8] sm:$0xff]
        %v660 = vld [vmem:[%s646 + $0x10] sm:$0xff]
        %v661 = vld [vmem:[%s646 + $0x18] sm:$0xff]
        %v662 = vld [vmem:[%s646 + $0x20] sm:$0xff]
        %v663 = vpack.c.bf16 %v659, %v658
        %v664 = vpack.c.bf16 %v661, %v660
        %v665 = vpack.c.bf16 %v662, %v662
        %v666 = vld [vmem:[%s4] sm:$0xf]
        %vm667 = vcmask 64512
        %v669 = vsel %vm667, %v663, 0
        %v672 = vsel %vm667, %v664, 0
        %v675 = vsel %vm667, %v665, 0
        %vm677 = vcmask 1043456
        %v679 = vsel %vm677, %v666, 0
        %681 = vmatprep.subr.bf16.mxu0 0
        %682 = vmatpush1.bf16.msra.mxu0 0
        %683 = vmatprep.subr.bf16.mxu0 0
        %684 = vmatpush1.bf16.msra.mxu0 0
        %685 = vmatprep.subr.bf16.mxu0 0
        %686 = vmatpush1.bf16.msra.mxu0 0
        %687 = vmatprep.subr.bf16.mxu0 0
        %688 = vmatpush1.bf16.msra.mxu0 0
        %689 = vmatprep.subr.bf16.mxu0 0
        %690 = vmatpush1.bf16.msra.mxu0 0
        %691 = vmatprep.subr.bf16.mxu0 0
        %692 = vmatpush1.bf16.msra.mxu0 0
        %693 = vmatprep.subr.bf16.mxu0 0
        %694 = vmatpush1.bf16.msra.mxu0 0
        %695 = vmatprep.subr.bf16.mxu0 0
        %696 = vmatpush1.bf16.msra.mxu0 %v679
        %697 = vmatprep.subr.bf16.mxu0 0
        %698 = vmatpush2.bf16.msra.mxu0 0
        %699 = vmatprep.subr.bf16.mxu0 0
        %700 = vmatpush2.bf16.msra.mxu0 0
        %701 = vmatprep.subr.bf16.mxu0 0
        %702 = vmatpush2.bf16.msra.mxu0 0
        %703 = vmatprep.subr.bf16.mxu0 0
        %704 = vmatpush2.bf16.msra.mxu0 0
        %705 = vmatprep.subr.bf16.mxu0 0
        %706 = vmatpush2.bf16.msra.mxu0 0
        %707 = vmatprep.subr.bf16.mxu0 0
        %708 = vmatpush2.bf16.msra.mxu0 0
        %709 = vmatprep.subr.bf16.mxu0 0
        %710 = vmatpush2.bf16.msra.mxu0 0
        %711 = vmatprep.subr.bf16.mxu0 0
        %712 = vmatpush2.bf16.msra.mxu0 0
        %713 = vmatprep.mubr.bf16.mxu0 0
        %714 = vmatmul.mubr.bf16.gmra.mxu0 %v669
        %v715 = vpop.f32.mrf.mxu0
        %v716 = vadd.f32 0.0, %v715
        %v717 = vpop.f32.mrf.mxu0
        %v718 = vpop.f32.mrf.mxu0
        %v719 = vadd.f32 0.0, %v718
        %v720 = vpop.f32.mrf.mxu0
        %721 = vmatprep.mubr.bf16.mxu0 0
        %722 = vmatmul.mubr.bf16.gmra.mxu0 %v672
        %v723 = vpop.f32.mrf.mxu0
        %v724 = vadd.f32 0.0, %v723
        %v725 = vpop.f32.mrf.mxu0
        %v726 = vpop.f32.mrf.mxu0
        %v727 = vadd.f32 0.0, %v726
        %v728 = vpop.f32.mrf.mxu0
        %729 = vmatprep.mubr.bf16.mxu0 0
        %730 = vmatmul.mubr.bf16.gmra.mxu0 %v675
        %v731 = vpop.f32.mrf.mxu0
        %v732 = vadd.f32 0.0, %v731
        %v733 = vpop.f32.mrf.mxu0
        %v734 = vpop.f32.mrf.mxu0
        %v735 = vpop.f32.mrf.mxu0
        %736 = vdwg.mxu0
        %738 = vset.pattern.permute.xlu0 0
        %739 = vperm.xlu0 %738, %v653
        %v740 = vpop.permute.xlu0 %739
        %743 = vset.pattern.permute.xlu0 0
        %744 = vperm.xlu0 %743, %v654
        %v745 = vpop.permute.xlu0 %744
        %748 = vset.pattern.permute.xlu0 0
        %749 = vperm.xlu0 %748, %v655
        %v750 = vpop.permute.xlu0 %749
        %753 = vset.pattern.permute.xlu0 0
        %754 = vperm.xlu0 %753, %v656
        %v755 = vpop.permute.xlu0 %754
        %758 = vset.pattern.permute.xlu0 0
        %759 = vperm.xlu0 %758, %v657
        %v760 = vpop.permute.xlu0 %759
        %v762 = vmul.f32 %v740, %v716
        %v763 = vmul.f32 %v745, %v719
        %v764 = vmul.f32 %v750, %v724
        %v765 = vmul.f32 %v755, %v727
        %v766 = vmul.f32 %v760, %v732
        %v767 = vpack.c.bf16 %v763, %v762
        %v768 = vpack.c.bf16 %v765, %v764
        %v769 = vpack.c.bf16 %v766, %v766
        %v775 = vunpack.c.l.b16 %v648
        %v776 = vunpack.c.l.b16 %v649
        %v777 = vunpack.c.l.b16 %v650
        %v778 = vunpack.c.l.b16 %v651
        %v779 = vunpack.c.l.b16 %v652
        %v780 = vpack.c.b16 %v776, %v775
        %v781 = vpack.c.b16 %v778, %v777
        %v782 = vpack.c.b16 %v779, %v779
        %vm783 = vcmask 326656
        %v785 = vsel %vm783, %v780, 0
        %v788 = vsel %vm783, %v781, 0
        %v791 = vsel %vm783, %v782, 0
        %v794 = vsel %vm677, %v769, 0
        %796 = vmatprep.subr.bf16.mxu0 0
        %797 = vmatpush1.bf16.msra.mxu0 0
        %798 = vmatprep.subr.bf16.mxu0 0
        %799 = vmatpush1.bf16.msra.mxu0 0
        %800 = vmatprep.subr.bf16.mxu0 0
        %801 = vmatpush1.bf16.msra.mxu0 0
        %802 = vmatprep.subr.bf16.mxu0 0
        %803 = vmatpush1.bf16.msra.mxu0 0
        %804 = vmatprep.subr.bf16.mxu0 0
        %805 = vmatpush1.bf16.msra.mxu0 0
        %806 = vmatprep.subr.bf16.mxu0 0
        %807 = vmatpush1.bf16.msra.mxu0 %v794
        %808 = vmatprep.subr.bf16.mxu0 0
        %809 = vmatpush1.bf16.msra.mxu0 %v768
        %810 = vmatprep.subr.bf16.mxu0 0
        %811 = vmatpush1.bf16.msra.mxu0 %v767
        %812 = vmatprep.subr.bf16.mxu0 0
        %813 = vmatpush2.bf16.msra.mxu0 0
        %814 = vmatprep.subr.bf16.mxu0 0
        %815 = vmatpush2.bf16.msra.mxu0 0
        %816 = vmatprep.subr.bf16.mxu0 0
        %817 = vmatpush2.bf16.msra.mxu0 0
        %818 = vmatprep.subr.bf16.mxu0 0
        %819 = vmatpush2.bf16.msra.mxu0 0
        %820 = vmatprep.subr.bf16.mxu0 0
        %821 = vmatpush2.bf16.msra.mxu0 0
        %822 = vmatprep.subr.bf16.mxu0 0
        %823 = vmatpush2.bf16.msra.mxu0 0
        %824 = vmatprep.subr.bf16.mxu0 0
        %825 = vmatpush2.bf16.msra.mxu0 0
        %826 = vmatprep.subr.bf16.mxu0 0
        %827 = vmatpush2.bf16.msra.mxu0 0
        %828 = vmatprep.mubr.bf16.mxu0 0
        %829 = vmatmul.mubr.bf16.gmra.mxu0 %v785
        %v830 = vpop.f32.mrf.mxu0
        %v831 = vadd.f32 0.0, %v830
        %v832 = vpop.f32.mrf.mxu0
        %v833 = vpop.f32.mrf.mxu0
        %v834 = vadd.f32 0.0, %v833
        %v835 = vpop.f32.mrf.mxu0
        %836 = vmatprep.mubr.bf16.mxu0 0
        %837 = vmatmul.mubr.bf16.gmra.mxu0 %v788
        %v838 = vpop.f32.mrf.mxu0
        %v839 = vadd.f32 0.0, %v838
        %v840 = vpop.f32.mrf.mxu0
        %v841 = vpop.f32.mrf.mxu0
        %v842 = vadd.f32 0.0, %v841
        %v843 = vpop.f32.mrf.mxu0
        %844 = vmatprep.mubr.bf16.mxu0 0
        %845 = vmatmul.mubr.bf16.gmra.mxu0 %v791
        %v846 = vpop.f32.mrf.mxu0
        %v847 = vadd.f32 0.0, %v846
        %v848 = vpop.f32.mrf.mxu0
        %v849 = vpop.f32.mrf.mxu0
        %v850 = vpop.f32.mrf.mxu0
        %851 = vdwg.mxu0
        %v852 = vmul.f32 %v740, %v831
        %v853 = vmul.f32 %v745, %v834
        %v854 = vmul.f32 %v750, %v839
        %v855 = vmul.f32 %v755, %v842
        %v856 = vmul.f32 %v760, %v847
        %v857 = vld [vmem:[%s5] sm:$0x1]
        %v859 = vlaneseq
        %v860 = vshrl.u32 %v859, 7
        %v861 = vsub.s32 0, %v860
        %v862 = vrot.slane %v857, %v861
        %v864 = vadd.f32 %v852, %v862
        %v865 = vadd.f32 %v853, %v862
        %v866 = vadd.f32 %v854, %v862
        %v867 = vadd.f32 %v855, %v862
        %v868 = vadd.f32 %v856, %v862
        %v869 = vmax.f32 %v864, 0.0
        %v870 = vmax.f32 %v865, 0.0
        %v871 = vmax.f32 %v866, 0.0
        %v872 = vmax.f32 %v867, 0.0
        %v873 = vmax.f32 %v868, 0.0
        %v874 = vpack.c.bf16 %v870, %v869
        %v875 = vpack.c.bf16 %v872, %v871
        %v876 = vpack.c.bf16 %v873, %v873
        %v877 = vld [vmem:[%s6] sm:$0xf]
        %v878 = vld [vmem:[%s6 + $0x4] sm:$0xf]
        %v881 = vunpack.c.l.b16 %v877
        %v882 = vunpack.c.l.b16 %v878
        %v883 = vpack.c.b16 %v882, %v881
        %vm885 = vcmask 130048
        %v887 = vsel %vm885, %v874, 0
        %v890 = vsel %vm885, %v875, 0
        %v893 = vsel %vm885, %v876, 0
        %895 = vmatprep.subr.bf16.mxu0 0
        %896 = vmatpush1.bf16.msra.mxu0 0
        %897 = vmatprep.subr.bf16.mxu0 0
        %898 = vmatpush1.bf16.msra.mxu0 0
        %899 = vmatprep.subr.bf16.mxu0 0
        %900 = vmatpush1.bf16.msra.mxu0 0
        %901 = vmatprep.subr.bf16.mxu0 0
        %902 = vmatpush1.bf16.msra.mxu0 0
        %903 = vmatprep.subr.bf16.mxu0 0
        %904 = vmatpush1.bf16.msra.mxu0 0
        %905 = vmatprep.subr.bf16.mxu0 0
        %906 = vmatpush1.bf16.msra.mxu0 0
        %907 = vmatprep.subr.bf16.mxu0 0
        %908 = vmatpush1.bf16.msra.mxu0 0
        %909 = vmatprep.subr.bf16.mxu0 0
        %910 = vmatpush1.bf16.msra.mxu0 %v883
        %911 = vmatprep.subr.bf16.mxu0 0
        %912 = vmatpush2.bf16.msra.mxu0 0
        %913 = vmatprep.subr.bf16.mxu0 0
        %914 = vmatpush2.bf16.msra.mxu0 0
        %915 = vmatprep.subr.bf16.mxu0 0
        %916 = vmatpush2.bf16.msra.mxu0 0
        %917 = vmatprep.subr.bf16.mxu0 0
        %918 = vmatpush2.bf16.msra.mxu0 0
        %919 = vmatprep.subr.bf16.mxu0 0
        %920 = vmatpush2.bf16.msra.mxu0 0
        %921 = vmatprep.subr.bf16.mxu0 0
        %922 = vmatpush2.bf16.msra.mxu0 0
        %923 = vmatprep.subr.bf16.mxu0 0
        %924 = vmatpush2.bf16.msra.mxu0 0
        %925 = vmatprep.subr.bf16.mxu0 0
        %926 = vmatpush2.bf16.msra.mxu0 0
        %927 = vmatprep.mubr.bf16.mxu0 0
        %928 = vmatmul.mubr.bf16.gmra.mxu0 %v887
        %v929 = vpop.f32.mrf.mxu0
        %v930 = vadd.f32 0.0, %v929
        %v931 = vpop.f32.mrf.mxu0
        %v932 = vpop.f32.mrf.mxu0
        %v933 = vadd.f32 0.0, %v932
        %v934 = vpop.f32.mrf.mxu0
        %935 = vmatprep.mubr.bf16.mxu0 0
        %936 = vmatmul.mubr.bf16.gmra.mxu0 %v890
        %v937 = vpop.f32.mrf.mxu0
        %v938 = vadd.f32 0.0, %v937
        %v939 = vpop.f32.mrf.mxu0
        %v940 = vpop.f32.mrf.mxu0
        %v941 = vadd.f32 0.0, %v940
        %v942 = vpop.f32.mrf.mxu0
        %943 = vmatprep.mubr.bf16.mxu0 0
        %944 = vmatmul.mubr.bf16.gmra.mxu0 %v893
        %v945 = vpop.f32.mrf.mxu0
        %v946 = vadd.f32 0.0, %v945
        %v947 = vpop.f32.mrf.mxu0
        %v948 = vpop.f32.mrf.mxu0
        %v949 = vpop.f32.mrf.mxu0
        %950 = vdwg.mxu0
        %v951 = vmul.f32 %v740, %v930
        %v952 = vmul.f32 %v745, %v933
        %v953 = vmul.f32 %v750, %v938
        %v954 = vmul.f32 %v755, %v941
        %v955 = vmul.f32 %v760, %v946
        %v956 = vpack.c.bf16 %v952, %v951
        %v957 = vpack.c.bf16 %v954, %v953
        %v958 = vpack.c.bf16 %v955, %v955
        %v960 = vsel %vm677, %v958, 0
        %962 = vmatprep.subr.bf16.mxu0 0
        %963 = vmatpush1.bf16.msra.mxu0 0
        %964 = vmatprep.subr.bf16.mxu0 0
        %965 = vmatpush1.bf16.msra.mxu0 0
        %966 = vmatprep.subr.bf16.mxu0 0
        %967 = vmatpush1.bf16.msra.mxu0 0
        %968 = vmatprep.subr.bf16.mxu0 0
        %969 = vmatpush1.bf16.msra.mxu0 0
        %970 = vmatprep.subr.bf16.mxu0 0
        %971 = vmatpush1.bf16.msra.mxu0 0
        %972 = vmatprep.subr.bf16.mxu0 0
        %973 = vmatpush1.bf16.msra.mxu0 %v960
        %974 = vmatprep.subr.bf16.mxu0 0
        %975 = vmatpush1.bf16.msra.mxu0 %v957
        %976 = vmatprep.subr.bf16.mxu0 0
        %977 = vmatpush1.bf16.msra.mxu0 %v956
        %978 = vmatprep.subr.bf16.mxu0 0
        %979 = vmatpush2.bf16.msra.mxu0 0
        %980 = vmatprep.subr.bf16.mxu0 0
        %981 = vmatpush2.bf16.msra.mxu0 0
        %982 = vmatprep.subr.bf16.mxu0 0
        %983 = vmatpush2.bf16.msra.mxu0 0
        %984 = vmatprep.subr.bf16.mxu0 0
        %985 = vmatpush2.bf16.msra.mxu0 0
        %986 = vmatprep.subr.bf16.mxu0 0
        %987 = vmatpush2.bf16.msra.mxu0 0
        %988 = vmatprep.subr.bf16.mxu0 0
        %989 = vmatpush2.bf16.msra.mxu0 0
        %990 = vmatprep.subr.bf16.mxu0 0
        %991 = vmatpush2.bf16.msra.mxu0 0
        %992 = vmatprep.subr.bf16.mxu0 0
        %993 = vmatpush2.bf16.msra.mxu0 0
        %994 = vmatprep.mubr.bf16.mxu0 0
        %995 = vmatmul.mubr.bf16.gmra.mxu0 %v785
        %v996 = vpop.f32.mrf.mxu0
        %v997 = vadd.f32 0.0, %v996
        %v998 = vpop.f32.mrf.mxu0
        %v999 = vpop.f32.mrf.mxu0
        %v1000 = vadd.f32 0.0, %v999
        %v1001 = vpop.f32.mrf.mxu0
        %1002 = vmatprep.mubr.bf16.mxu0 0
        %1003 = vmatmul.mubr.bf16.gmra.mxu0 %v788
        %v1004 = vpop.f32.mrf.mxu0
        %v1005 = vadd.f32 0.0, %v1004
        %v1006 = vpop.f32.mrf.mxu0
        %v1007 = vpop.f32.mrf.mxu0
        %v1008 = vadd.f32 0.0, %v1007
        %v1009 = vpop.f32.mrf.mxu0
        %1010 = vmatprep.mubr.bf16.mxu0 0
        %1011 = vmatmul.mubr.bf16.gmra.mxu0 %v791
        %v1012 = vpop.f32.mrf.mxu0
        %v1013 = vadd.f32 0.0, %v1012
        %v1014 = vpop.f32.mrf.mxu0
        %v1015 = vpop.f32.mrf.mxu0
        %v1016 = vpop.f32.mrf.mxu0
        %1017 = vdwg.mxu0
        %v1018 = vmul.f32 %v740, %v997
        %v1019 = vmul.f32 %v745, %v1000
        %v1020 = vmul.f32 %v750, %v1005
        %v1021 = vmul.f32 %v755, %v1008
        %v1022 = vmul.f32 %v760, %v1013
        %v1023 = vld [vmem:[%s7] sm:$0x1]
        %v1025 = vlaneseq
        %v1026 = vshrl.u32 %v1025, 7
        %v1027 = vsub.s32 0, %v1026
        %v1028 = vrot.slane %v1023, %v1027
        %v1030 = vadd.f32 %v1018, %v1028
        %v1031 = vadd.f32 %v1019, %v1028
        %v1032 = vadd.f32 %v1020, %v1028
        %v1033 = vadd.f32 %v1021, %v1028
        %v1034 = vadd.f32 %v1022, %v1028
        %v1035 = vmax.f32 %v1030, 0.0
        %v1036 = vmax.f32 %v1031, 0.0
        %v1037 = vmax.f32 %v1032, 0.0
        %v1038 = vmax.f32 %v1033, 0.0
        %v1039 = vmax.f32 %v1034, 0.0
        %v1040 = vpack.c.bf16 %v1036, %v1035
        %v1041 = vpack.c.bf16 %v1038, %v1037
        %v1042 = vpack.c.bf16 %v1039, %v1039
        %v1043 = vld [vmem:[%s8] sm:$0xf]
        %v1044 = vld [vmem:[%s8 + $0x4] sm:$0xf]
        %v1045 = vld [vmem:[%s8 + $0x8] sm:$0xf]
        %v1046 = vld [vmem:[%s8 + $0xc] sm:$0xf]
        %v1051 = vunpack.c.l.b16 %v1043
        %v1052 = vunpack.c.l.b16 %v1044
        %v1053 = vunpack.c.l.b16 %v1045
        %v1054 = vunpack.c.l.b16 %v1046
        %v1055 = vpack.c.b16 %v1052, %v1051
        %v1056 = vpack.c.b16 %v1054, %v1053
        %vm1059 = vcmask 261120
        %v1061 = vsel %vm1059, %v1040, 0
        %v1064 = vsel %vm1059, %v1041, 0
        %v1067 = vsel %vm1059, %v1042, 0
        %1069 = vmatprep.subr.bf16.mxu0 0
        %1070 = vmatpush1.bf16.msra.mxu0 0
        %1071 = vmatprep.subr.bf16.mxu0 0
        %1072 = vmatpush1.bf16.msra.mxu0 0
        %1073 = vmatprep.subr.bf16.mxu0 0
        %1074 = vmatpush1.bf16.msra.mxu0 0
        %1075 = vmatprep.subr.bf16.mxu0 0
        %1076 = vmatpush1.bf16.msra.mxu0 0
        %1077 = vmatprep.subr.bf16.mxu0 0
        %1078 = vmatpush1.bf16.msra.mxu0 0
        %1079 = vmatprep.subr.bf16.mxu0 0
        %1080 = vmatpush1.bf16.msra.mxu0 0
        %1081 = vmatprep.subr.bf16.mxu0 0
        %1082 = vmatpush1.bf16.msra.mxu0 %v1056
        %1083 = vmatprep.subr.bf16.mxu0 0
        %1084 = vmatpush1.bf16.msra.mxu0 %v1055
        %1085 = vmatprep.subr.bf16.mxu0 0
        %1086 = vmatpush2.bf16.msra.mxu0 0
        %1087 = vmatprep.subr.bf16.mxu0 0
        %1088 = vmatpush2.bf16.msra.mxu0 0
        %1089 = vmatprep.subr.bf16.mxu0 0
        %1090 = vmatpush2.bf16.msra.mxu0 0
        %1091 = vmatprep.subr.bf16.mxu0 0
        %1092 = vmatpush2.bf16.msra.mxu0 0
        %1093 = vmatprep.subr.bf16.mxu0 0
        %1094 = vmatpush2.bf16.msra.mxu0 0
        %1095 = vmatprep.subr.bf16.mxu0 0
        %1096 = vmatpush2.bf16.msra.mxu0 0
        %1097 = vmatprep.subr.bf16.mxu0 0
        %1098 = vmatpush2.bf16.msra.mxu0 0
        %1099 = vmatprep.subr.bf16.mxu0 0
        %1100 = vmatpush2.bf16.msra.mxu0 0
        %1101 = vmatprep.mubr.bf16.mxu0 0
        %1102 = vmatmul.mubr.bf16.gmra.mxu0 %v1061
        %v1103 = vpop.f32.mrf.mxu0
        %v1104 = vadd.f32 0.0, %v1103
        %v1105 = vpop.f32.mrf.mxu0
        %v1106 = vpop.f32.mrf.mxu0
        %v1107 = vadd.f32 0.0, %v1106
        %v1108 = vpop.f32.mrf.mxu0
        %1109 = vmatprep.mubr.bf16.mxu0 0
        %1110 = vmatmul.mubr.bf16.gmra.mxu0 %v1064
        %v1111 = vpop.f32.mrf.mxu0
        %v1112 = vadd.f32 0.0, %v1111
        %v1113 = vpop.f32.mrf.mxu0
        %v1114 = vpop.f32.mrf.mxu0
        %v1115 = vadd.f32 0.0, %v1114
        %v1116 = vpop.f32.mrf.mxu0
        %1117 = vmatprep.mubr.bf16.mxu0 0
        %1118 = vmatmul.mubr.bf16.gmra.mxu0 %v1067
        %v1119 = vpop.f32.mrf.mxu0
        %v1120 = vadd.f32 0.0, %v1119
        %v1121 = vpop.f32.mrf.mxu0
        %v1122 = vpop.f32.mrf.mxu0
        %v1123 = vpop.f32.mrf.mxu0
        %1124 = vdwg.mxu0
        %v1125 = vmul.f32 %v740, %v1104
        %v1126 = vmul.f32 %v745, %v1107
        %v1127 = vmul.f32 %v750, %v1112
        %v1128 = vmul.f32 %v755, %v1115
        %v1129 = vmul.f32 %v760, %v1120
        %v1130 = vpack.c.bf16 %v1126, %v1125
        %v1131 = vpack.c.bf16 %v1128, %v1127
        %v1132 = vpack.c.bf16 %v1129, %v1129
        %v1134 = vsel %vm677, %v1132, 0
        %1136 = vmatprep.subr.bf16.mxu0 0
        %1137 = vmatpush1.bf16.msra.mxu0 0
        %1138 = vmatprep.subr.bf16.mxu0 0
        %1139 = vmatpush1.bf16.msra.mxu0 0
        %1140 = vmatprep.subr.bf16.mxu0 0
        %1141 = vmatpush1.bf16.msra.mxu0 0
        %1142 = vmatprep.subr.bf16.mxu0 0
        %1143 = vmatpush1.bf16.msra.mxu0 0
        %1144 = vmatprep.subr.bf16.mxu0 0
        %1145 = vmatpush1.bf16.msra.mxu0 0
        %1146 = vmatprep.subr.bf16.mxu0 0
        %1147 = vmatpush1.bf16.msra.mxu0 %v1134
        %1148 = vmatprep.subr.bf16.mxu0 0
        %1149 = vmatpush1.bf16.msra.mxu0 %v1131
        %1150 = vmatprep.subr.bf16.mxu0 0
        %1151 = vmatpush1.bf16.msra.mxu0 %v1130
        %1152 = vmatprep.subr.bf16.mxu0 0
        %1153 = vmatpush2.bf16.msra.mxu0 0
        %1154 = vmatprep.subr.bf16.mxu0 0
        %1155 = vmatpush2.bf16.msra.mxu0 0
        %1156 = vmatprep.subr.bf16.mxu0 0
        %1157 = vmatpush2.bf16.msra.mxu0 0
        %1158 = vmatprep.subr.bf16.mxu0 0
        %1159 = vmatpush2.bf16.msra.mxu0 0
        %1160 = vmatprep.subr.bf16.mxu0 0
        %1161 = vmatpush2.bf16.msra.mxu0 0
        %1162 = vmatprep.subr.bf16.mxu0 0
        %1163 = vmatpush2.bf16.msra.mxu0 0
        %1164 = vmatprep.subr.bf16.mxu0 0
        %1165 = vmatpush2.bf16.msra.mxu0 0
        %1166 = vmatprep.subr.bf16.mxu0 0
        %1167 = vmatpush2.bf16.msra.mxu0 0
        %1168 = vmatprep.mubr.bf16.mxu0 0
        %1169 = vmatmul.mubr.bf16.gmra.mxu0 %v785
        %v1170 = vpop.f32.mrf.mxu0
        %v1171 = vadd.f32 0.0, %v1170
        %v1172 = vpop.f32.mrf.mxu0
        %v1173 = vpop.f32.mrf.mxu0
        %v1174 = vadd.f32 0.0, %v1173
        %v1175 = vpop.f32.mrf.mxu0
        %1176 = vmatprep.mubr.bf16.mxu0 0
        %1177 = vmatmul.mubr.bf16.gmra.mxu0 %v788
        %v1178 = vpop.f32.mrf.mxu0
        %v1179 = vadd.f32 0.0, %v1178
        %v1180 = vpop.f32.mrf.mxu0
        %v1181 = vpop.f32.mrf.mxu0
        %v1182 = vadd.f32 0.0, %v1181
        %v1183 = vpop.f32.mrf.mxu0
        %1184 = vmatprep.mubr.bf16.mxu0 0
        %1185 = vmatmul.mubr.bf16.gmra.mxu0 %v791
        %v1186 = vpop.f32.mrf.mxu0
        %v1187 = vadd.f32 0.0, %v1186
        %v1188 = vpop.f32.mrf.mxu0
        %v1189 = vpop.f32.mrf.mxu0
        %v1190 = vpop.f32.mrf.mxu0
        %1191 = vdwg.mxu0
        %v1192 = vmul.f32 %v740, %v1171
        %v1193 = vmul.f32 %v745, %v1174
        %v1194 = vmul.f32 %v750, %v1179
        %v1195 = vmul.f32 %v755, %v1182
        %v1196 = vmul.f32 %v760, %v1187
        %v1197 = vld [vmem:[%s9] sm:$0x1]
        %v1199 = vlaneseq
        %v1200 = vshrl.u32 %v1199, 7
        %v1201 = vsub.s32 0, %v1200
        %v1202 = vrot.slane %v1197, %v1201
        %v1204 = vadd.f32 %v1192, %v1202
        %v1205 = vadd.f32 %v1193, %v1202
        %v1206 = vadd.f32 %v1194, %v1202
        %v1207 = vadd.f32 %v1195, %v1202
        %v1208 = vadd.f32 %v1196, %v1202
        %v1209 = vmax.f32 %v1204, 0.0
        %v1210 = vmax.f32 %v1205, 0.0
        %v1211 = vmax.f32 %v1206, 0.0
        %v1212 = vmax.f32 %v1207, 0.0
        %v1213 = vmax.f32 %v1208, 0.0
        %v1214 = vmul.f32 %v740, %v1209
        %v1215 = vmul.f32 %v745, %v1210
        %v1216 = vmul.f32 %v750, %v1211
        %v1217 = vmul.f32 %v755, %v1212
        %v1218 = vmul.f32 %v760, %v1213
        %v1219 = vpack.c.bf16 %v1215, %v1214
        %v1220 = vpack.c.bf16 %v1217, %v1216
        %v1221 = vpack.c.bf16 %v1218, %v1218
        %v1223 = vsel %vm677, %v1221, 0
        %1225 = vmatprep.subr.bf16.mxu0 0
        %1226 = vmatpush1.bf16.msra.mxu0 0
        %1227 = vmatprep.subr.bf16.mxu0 0
        %1228 = vmatpush1.bf16.msra.mxu0 0
        %1229 = vmatprep.subr.bf16.mxu0 0
        %1230 = vmatpush1.bf16.msra.mxu0 0
        %1231 = vmatprep.subr.bf16.mxu0 0
        %1232 = vmatpush1.bf16.msra.mxu0 0
        %1233 = vmatprep.subr.bf16.mxu0 0
        %1234 = vmatpush1.bf16.msra.mxu0 0
        %1235 = vmatprep.subr.bf16.mxu0 0
        %1236 = vmatpush1.bf16.msra.mxu0 %v1223
        %1237 = vmatprep.subr.bf16.mxu0 0
        %1238 = vmatpush1.bf16.msra.mxu0 %v1220
        %1239 = vmatprep.subr.bf16.mxu0 0
        %1240 = vmatpush1.bf16.msra.mxu0 %v1219
        %1241 = vmatprep.subr.bf16.mxu0 0
        %1242 = vmatpush2.bf16.msra.mxu0 0
        %1243 = vmatprep.subr.bf16.mxu0 0
        %1244 = vmatpush2.bf16.msra.mxu0 0
        %1245 = vmatprep.subr.bf16.mxu0 0
        %1246 = vmatpush2.bf16.msra.mxu0 0
        %1247 = vmatprep.subr.bf16.mxu0 0
        %1248 = vmatpush2.bf16.msra.mxu0 0
        %1249 = vmatprep.subr.bf16.mxu0 0
        %1250 = vmatpush2.bf16.msra.mxu0 0
        %1251 = vmatprep.subr.bf16.mxu0 0
        %1252 = vmatpush2.bf16.msra.mxu0 0
        %1253 = vmatprep.subr.bf16.mxu0 0
        %1254 = vmatpush2.bf16.msra.mxu0 0
        %1255 = vmatprep.subr.bf16.mxu0 0
        %1256 = vmatpush2.bf16.msra.mxu0 0
        %1257 = vmatprep.mubr.bf16.mxu0 0
        %1258 = vmatmul.mubr.bf16.gmra.mxu0 %v785
        %v1259 = vpop.f32.mrf.mxu0
        %v1260 = vadd.f32 0.0, %v1259
        %v1261 = vpop.f32.mrf.mxu0
        %v1262 = vpop.f32.mrf.mxu0
        %v1263 = vadd.f32 0.0, %v1262
        %v1264 = vpop.f32.mrf.mxu0
        %1265 = vmatprep.mubr.bf16.mxu0 0
        %1266 = vmatmul.mubr.bf16.gmra.mxu0 %v788
        %v1267 = vpop.f32.mrf.mxu0
        %v1268 = vadd.f32 0.0, %v1267
        %v1269 = vpop.f32.mrf.mxu0
        %v1270 = vpop.f32.mrf.mxu0
        %v1271 = vadd.f32 0.0, %v1270
        %v1272 = vpop.f32.mrf.mxu0
        %1273 = vmatprep.mubr.bf16.mxu0 0
        %1274 = vmatmul.mubr.bf16.gmra.mxu0 %v791
        %v1275 = vpop.f32.mrf.mxu0
        %v1276 = vadd.f32 0.0, %v1275
        %v1277 = vpop.f32.mrf.mxu0
        %v1278 = vpop.f32.mrf.mxu0
        %v1279 = vpop.f32.mrf.mxu0
        %1280 = vdwg.mxu0
        %v1281 = vmul.f32 %v740, %v1260
        %v1282 = vmul.f32 %v745, %v1263
        %v1283 = vmul.f32 %v750, %v1268
        %v1284 = vmul.f32 %v755, %v1271
        %v1285 = vmul.f32 %v760, %v1276
        %v1286 = vpack.c.bf16 %v1282, %v1281
        %v1287 = vpack.c.bf16 %v1284, %v1283
        %v1288 = vpack.c.bf16 %v1285, %v1285
        %v1289 = vld [vmem:[%s10] sm:$0xff]
        %v1290 = vld [vmem:[%s10 + $0x8] sm:$0xff]
        %v1291 = vld [vmem:[%s10 + $0x10] sm:$0xff]
        %v1292 = vld [vmem:[%s10 + $0x18] sm:$0xff]
        %v1293 = vld [vmem:[%s10 + $0x20] sm:$0xff]
        %v1294 = vld [vmem:[%s10 + $0x28] sm:$0xff]
        %v1295 = vld [vmem:[%s10 + $0x30] sm:$0xff]
        %v1296 = vld [vmem:[%s10 + $0x38] sm:$0xff]
        %v1297 = vld [vmem:[%s11] sm:$0x3]
        %v1299 = vlaneseq
        %v1300 = vshrl.u32 %v1299, 7
        %v1301 = vsub.s32 0, %v1300
        %v1302 = vrot.slane %v1297, %v1301
        %v1303 = vlaneseq
        %v1304 = vshrl.u32 %v1303, 7
        %v1305 = vsub.s32 1, %v1304
        %v1306 = vrot.slane %v1297, %v1305
        %v1317 = vunpack.c.l.b16 %v1289
        %v1318 = vunpack.c.h.b16 %v1289
        %v1319 = vunpack.c.l.b16 %v1290
        %v1320 = vunpack.c.h.b16 %v1290
        %v1321 = vunpack.c.l.b16 %v1291
        %v1322 = vunpack.c.h.b16 %v1291
        %v1323 = vunpack.c.l.b16 %v1292
        %v1324 = vunpack.c.h.b16 %v1292
        %v1325 = vunpack.c.l.b16 %v1293
        %v1326 = vunpack.c.h.b16 %v1293
        %v1327 = vunpack.c.l.b16 %v1294
        %v1328 = vunpack.c.h.b16 %v1294
        %v1329 = vunpack.c.l.b16 %v1295
        %v1330 = vunpack.c.h.b16 %v1295
        %v1331 = vunpack.c.l.b16 %v1296
        %v1332 = vunpack.c.h.b16 %v1296
        %v1333 = vpack.c.b16 %v1319, %v1317
        %v1334 = vpack.c.b16 %v1320, %v1318
        %v1335 = vpack.c.b16 %v1323, %v1321
        %v1336 = vpack.c.b16 %v1324, %v1322
        %v1337 = vpack.c.b16 %v1327, %v1325
        %v1338 = vpack.c.b16 %v1328, %v1326
        %v1339 = vpack.c.b16 %v1331, %v1329
        %v1340 = vpack.c.b16 %v1332, %v1330
        %vm1349 = vcmask 523264
        %v1351 = vsel %vm1349, %v1286, 0
        %v1354 = vsel %vm1349, %v1287, 0
        %v1357 = vsel %vm1349, %v1288, 0
        %1359 = vmatprep.subr.bf16.mxu0 0
        %1360 = vmatpush1.bf16.msra.mxu0 0
        %1361 = vmatprep.subr.bf16.mxu0 0
        %1362 = vmatpush1.bf16.msra.mxu0 0
        %1363 = vmatprep.subr.bf16.mxu0 0
        %1364 = vmatpush1.bf16.msra.mxu0 0
        %1365 = vmatprep.subr.bf16.mxu0 0
        %1366 = vmatpush1.bf16.msra.mxu0 0
        %1367 = vmatprep.subr.bf16.mxu0 %v1340
        %1368 = vmatpush1.bf16.msra.mxu0 %v1339
        %1369 = vmatprep.subr.bf16.mxu0 %v1338
        %1370 = vmatpush1.bf16.msra.mxu0 %v1337
        %1371 = vmatprep.subr.bf16.mxu0 %v1336
        %1372 = vmatpush1.bf16.msra.mxu0 %v1335
        %1373 = vmatprep.subr.bf16.mxu0 %v1334
        %1374 = vmatpush1.bf16.msra.mxu0 %v1333
        %1375 = vmatprep.subr.bf16.mxu0 0
        %1376 = vmatpush2.bf16.msra.mxu0 0
        %1377 = vmatprep.subr.bf16.mxu0 0
        %1378 = vmatpush2.bf16.msra.mxu0 0
        %1379 = vmatprep.subr.bf16.mxu0 0
        %1380 = vmatpush2.bf16.msra.mxu0 0
        %1381 = vmatprep.subr.bf16.mxu0 0
        %1382 = vmatpush2.bf16.msra.mxu0 0
        %1383 = vmatprep.subr.bf16.mxu0 0
        %1384 = vmatpush2.bf16.msra.mxu0 0
        %1385 = vmatprep.subr.bf16.mxu0 0
        %1386 = vmatpush2.bf16.msra.mxu0 0
        %1387 = vmatprep.subr.bf16.mxu0 0
        %1388 = vmatpush2.bf16.msra.mxu0 0
        %1389 = vmatprep.subr.bf16.mxu0 0
        %1390 = vmatpush2.bf16.msra.mxu0 0
        %1391 = vmatprep.mubr.bf16.mxu0 0
        %1392 = vmatmul.mubr.bf16.gmra.mxu0 %v1351
        %v1393 = vpop.f32.mrf.mxu0
        %v1394 = vadd.f32 %v1302, %v1393
        %v1395 = vpop.f32.mrf.mxu0
        %v1396 = vadd.f32 %v1306, %v1395
        %v1397 = vpop.f32.mrf.mxu0
        %v1398 = vadd.f32 %v1302, %v1397
        %v1399 = vpop.f32.mrf.mxu0
        %v1400 = vadd.f32 %v1306, %v1399
        %1401 = vmatprep.mubr.bf16.mxu0 0
        %1402 = vmatmul.mubr.bf16.gmra.mxu0 %v1354
        %v1403 = vpop.f32.mrf.mxu0
        %v1404 = vadd.f32 %v1302, %v1403
        %v1405 = vpop.f32.mrf.mxu0
        %v1406 = vadd.f32 %v1306, %v1405
        %v1407 = vpop.f32.mrf.mxu0
        %v1408 = vadd.f32 %v1302, %v1407
        %v1409 = vpop.f32.mrf.mxu0
        %v1410 = vadd.f32 %v1306, %v1409
        %1411 = vmatprep.mubr.bf16.mxu0 0
        %1412 = vmatmul.mubr.bf16.gmra.mxu0 %v1357
        %v1413 = vpop.f32.mrf.mxu0
        %v1414 = vadd.f32 %v1302, %v1413
        %v1415 = vpop.f32.mrf.mxu0
        %v1416 = vadd.f32 %v1306, %v1415
        %v1417 = vpop.f32.mrf.mxu0
        %v1418 = vpop.f32.mrf.mxu0
        %1419 = vdwg.mxu0
        %v1420 = vmax.f32 %v1394, 0.0
        %v1421 = vmax.f32 %v1396, 0.0
        %v1422 = vmax.f32 %v1398, 0.0
        %v1423 = vmax.f32 %v1400, 0.0
        %v1424 = vmax.f32 %v1404, 0.0
        %v1425 = vmax.f32 %v1406, 0.0
        %v1426 = vmax.f32 %v1408, 0.0
        %v1427 = vmax.f32 %v1410, 0.0
        %v1428 = vmax.f32 %v1414, 0.0
        %v1429 = vmax.f32 %v1416, 0.0
        %s1430 = sld [smem:[#allocation3 + %s40]]
        %v1431 = vlaneseq
        %v1432 = vshrl.u32 %v1431, 7
        %v1433 = vadd.s32 %v1432, 8
        %v1434 = vadd.s32 %v1432, 16
        %v1435 = vadd.s32 %v1432, 24
        %v1436 = vadd.s32 %v1432, 32
        %v1437 = vstv %s1430
        %vm1438 = vcmp.lt.s32.totalorder %v1432, %v1437
        %vm1439 = vcmp.lt.s32.totalorder %v1433, %v1437
        %vm1440 = vcmp.lt.s32.totalorder %v1434, %v1437
        %vm1441 = vcmp.lt.s32.totalorder %v1435, %v1437
        %vm1442 = vcmp.lt.s32.totalorder %v1436, %v1437
        %v1443 = vsel %vm1438, %v1420, 0.0
        %v1444 = vsel %vm1438, %v1421, 0.0
        %v1445 = vsel %vm1439, %v1422, 0.0
        %v1446 = vsel %vm1439, %v1423, 0.0
        %v1447 = vsel %vm1440, %v1424, 0.0
        %v1448 = vsel %vm1440, %v1425, 0.0
        %v1449 = vsel %vm1441, %v1426, 0.0
        %v1450 = vsel %vm1441, %v1427, 0.0
        %v1451 = vsel %vm1442, %v1428, 0.0
        %v1452 = vsel %vm1442, %v1429, 0.0
        %v1453 = vmax.f32 %v1443, %v1447
        %v1454 = vmax.f32 %v1445, %v1449
        %v1455 = vmax.f32 %v1453, %v1451
        %v1456 = vmax.f32 %v1455, %v1454
        %v1457 = vrot.slane %v1456, 4
        %v1458 = vmax.f32 %v1456, %v1457
        %v1459 = vrot.slane %v1458, 2
        %v1460 = vmax.f32 %v1458, %v1459
        %v1461 = vrot.slane %v1460, 1
        %v1462 = vmax.f32 %v1460, %v1461
        %vm1463 = vcmask 195584
        %v1464 = vsel %vm1463, %v1444, -inf
        %v1465 = vsel %vm1463, %v1446, -inf
        %v1466 = vsel %vm1463, %v1448, -inf
        %v1467 = vmax.f32 %v1464, %v1466
        %v1468 = vsel %vm1463, %v1450, -inf
        %v1469 = vmax.f32 %v1465, %v1468
        %v1470 = vsel %vm1463, %v1452, -inf
        %v1471 = vmax.f32 %v1467, %v1470
        %v1472 = vmax.f32 %v1471, %v1469
        %v1473 = vrot.slane %v1472, 4
        %v1474 = vmax.f32 %v1472, %v1473
        %v1475 = vrot.slane %v1474, 2
        %v1476 = vmax.f32 %v1474, %v1475
        %v1477 = vrot.slane %v1476, 1
        %v1478 = vmax.f32 %v1476, %v1477
        %v1479 = vpack.c.bf16 %v1462, %v1462
        %v1480 = vpack.c.bf16 %v1478, %v1478
        %v1481 = vld [vmem:[%s12] sm:$0xff]
        %v1482 = vld [vmem:[%s12 + $0x8] sm:$0xff]
        %v1483 = vld [vmem:[%s12 + $0x10] sm:$0xff]
        %v1484 = vld [vmem:[%s12 + $0x18] sm:$0xff]
        %v1485 = vld [vmem:[%s12 + $0x20] sm:$0xff]
        %v1486 = vld [vmem:[%s12 + $0x28] sm:$0xff]
        %v1487 = vld [vmem:[%s12 + $0x30] sm:$0xff]
        %v1488 = vld [vmem:[%s12 + $0x38] sm:$0xff]
        %v1489 = vld [vmem:[%s12 + $0x40] sm:$0xff]
        %v1490 = vld [vmem:[%s12 + $0x48] sm:$0xff]
        %v1491 = vld [vmem:[%s12 + $0x50] sm:$0xff]
        %v1492 = vld [vmem:[%s12 + $0x58] sm:$0xff]
        %v1493 = vld [vmem:[%s12 + $0x60] sm:$0xff]
        %v1494 = vld [vmem:[%s12 + $0x68] sm:$0xff]
        %v1495 = vld [vmem:[%s12 + $0x70] sm:$0xff]
        %v1496 = vld [vmem:[%s12 + $0x78] sm:$0xff]
        %v1497 = vld [vmem:[%s12 + $0x80] sm:$0xff]
        %v1498 = vld [vmem:[%s12 + $0x88] sm:$0xff]
        %v1499 = vld [vmem:[%s12 + $0x90] sm:$0xff]
        %v1500 = vld [vmem:[%s12 + $0x98] sm:$0xff]
        %v1501 = vld [vmem:[%s12 + $0xa0] sm:$0xff]
        %v1502 = vld [vmem:[%s12 + $0xa8] sm:$0xff]
        %v1503 = vld [vmem:[%s12 + $0xb0] sm:$0xff]
        %v1504 = vld [vmem:[%s12 + $0xb8] sm:$0xff]
        %v1505 = vld [vmem:[%s12 + $0xc0] sm:$0xff]
        %v1506 = vld [vmem:[%s12 + $0xc8] sm:$0xff]
        %v1507 = vld [vmem:[%s12 + $0xd0] sm:$0xff]
        %v1508 = vld [vmem:[%s12 + $0xd8] sm:$0xff]
        %v1509 = vld [vmem:[%s12 + $0xe0] sm:$0xff]
        %v1510 = vld [vmem:[%s12 + $0xe8] sm:$0xff]
        %v1511 = vld [vmem:[%s12 + $0xf0] sm:$0xff]
        %v1512 = vld [vmem:[%s12 + $0xf8] sm:$0xff]
        %v1513 = vld [vmem:[%s12 + $0x100] sm:$0xff]
        %v1514 = vld [vmem:[%s12 + $0x108] sm:$0xff]
        %v1515 = vld [vmem:[%s12 + $0x110] sm:$0xff]
        %v1516 = vld [vmem:[%s12 + $0x118] sm:$0xff]
        %v1517 = vld [vmem:[%s12 + $0x120] sm:$0xff]
        %v1518 = vld [vmem:[%s12 + $0x128] sm:$0xff]
        %v1519 = vld [vmem:[%s13] sm:$0xf]
        %v1558 = vunpack.c.l.b16 %v1481
        %v1559 = vunpack.c.h.b16 %v1481
        %v1560 = vunpack.c.l.b16 %v1482
        %v1561 = vunpack.c.h.b16 %v1482
        %v1562 = vunpack.c.l.b16 %v1483
        %v1563 = vunpack.c.h.b16 %v1483
        %v1564 = vunpack.c.l.b16 %v1484
        %v1565 = vunpack.c.h.b16 %v1484
        %v1566 = vunpack.c.l.b16 %v1485
        %v1567 = vunpack.c.h.b16 %v1485
        %v1568 = vunpack.c.l.b16 %v1486
        %v1569 = vunpack.c.h.b16 %v1486
        %v1570 = vunpack.c.l.b16 %v1487
        %v1571 = vunpack.c.h.b16 %v1487
        %v1572 = vunpack.c.l.b16 %v1488
        %v1573 = vunpack.c.h.b16 %v1488
        %v1574 = vunpack.c.l.b16 %v1489
        %v1575 = vunpack.c.h.b16 %v1489
        %v1576 = vunpack.c.l.b16 %v1490
        %v1577 = vunpack.c.h.b16 %v1490
        %v1578 = vunpack.c.l.b16 %v1491
        %v1579 = vunpack.c.h.b16 %v1491
        %v1580 = vunpack.c.l.b16 %v1492
        %v1581 = vunpack.c.h.b16 %v1492
        %v1582 = vunpack.c.l.b16 %v1493
        %v1583 = vunpack.c.h.b16 %v1493
        %v1584 = vunpack.c.l.b16 %v1494
        %v1585 = vunpack.c.h.b16 %v1494
        %v1586 = vunpack.c.l.b16 %v1495
        %v1587 = vunpack.c.h.b16 %v1495
        %v1588 = vunpack.c.l.b16 %v1496
        %v1589 = vunpack.c.h.b16 %v1496
        %v1590 = vunpack.c.l.b16 %v1497
        %v1591 = vunpack.c.h.b16 %v1497
        %v1592 = vunpack.c.l.b16 %v1498
        %v1593 = vunpack.c.h.b16 %v1498
        %v1594 = vunpack.c.l.b16 %v1499
        %v1595 = vunpack.c.h.b16 %v1499
        %v1596 = vunpack.c.l.b16 %v1500
        %v1597 = vunpack.c.h.b16 %v1500
        %v1598 = vunpack.c.l.b16 %v1501
        %v1599 = vunpack.c.h.b16 %v1501
        %v1600 = vunpack.c.l.b16 %v1502
        %v1601 = vunpack.c.h.b16 %v1502
        %v1602 = vunpack.c.l.b16 %v1503
        %v1603 = vunpack.c.h.b16 %v1503
        %v1604 = vunpack.c.l.b16 %v1504
        %v1605 = vunpack.c.h.b16 %v1504
        %v1606 = vunpack.c.l.b16 %v1505
        %v1607 = vunpack.c.h.b16 %v1505
        %v1608 = vunpack.c.l.b16 %v1506
        %v1609 = vunpack.c.h.b16 %v1506
        %v1610 = vunpack.c.l.b16 %v1507
        %v1611 = vunpack.c.h.b16 %v1507
        %v1612 = vunpack.c.l.b16 %v1508
        %v1613 = vunpack.c.h.b16 %v1508
        %v1614 = vunpack.c.l.b16 %v1509
        %v1615 = vunpack.c.h.b16 %v1509
        %v1616 = vunpack.c.l.b16 %v1510
        %v1617 = vunpack.c.h.b16 %v1510
        %v1618 = vunpack.c.l.b16 %v1511
        %v1619 = vunpack.c.h.b16 %v1511
        %v1620 = vunpack.c.l.b16 %v1512
        %v1621 = vunpack.c.h.b16 %v1512
        %v1622 = vunpack.c.l.b16 %v1513
        %v1623 = vunpack.c.h.b16 %v1513
        %v1624 = vunpack.c.l.b16 %v1514
        %v1625 = vunpack.c.h.b16 %v1514
        %v1626 = vunpack.c.l.b16 %v1515
        %v1627 = vunpack.c.h.b16 %v1515
        %v1628 = vunpack.c.l.b16 %v1516
        %v1629 = vunpack.c.h.b16 %v1516
        %v1630 = vunpack.c.l.b16 %v1517
        %v1631 = vunpack.c.h.b16 %v1517
        %v1632 = vunpack.c.l.b16 %v1518
        %v1633 = vunpack.c.h.b16 %v1518
        %v1634 = vpack.c.b16 %v1562, %v1558
        %v1635 = vpack.c.b16 %v1563, %v1559
        %v1636 = vpack.c.b16 %v1564, %v1560
        %v1637 = vpack.c.b16 %v1565, %v1561
        %v1638 = vpack.c.b16 %v1570, %v1566
        %v1639 = vpack.c.b16 %v1571, %v1567
        %v1640 = vpack.c.b16 %v1572, %v1568
        %v1641 = vpack.c.b16 %v1573, %v1569
        %v1642 = vpack.c.b16 %v1578, %v1574
        %v1643 = vpack.c.b16 %v1579, %v1575
        %v1644 = vpack.c.b16 %v1580, %v1576
        %v1645 = vpack.c.b16 %v1581, %v1577
        %v1646 = vpack.c.b16 %v1586, %v1582
        %v1647 = vpack.c.b16 %v1587, %v1583
        %v1648 = vpack.c.b16 %v1588, %v1584
        %v1649 = vpack.c.b16 %v1589, %v1585
        %v1650 = vpack.c.b16 %v1594, %v1590
        %v1651 = vpack.c.b16 %v1595, %v1591
        %v1652 = vpack.c.b16 %v1596, %v1592
        %v1653 = vpack.c.b16 %v1597, %v1593
        %v1654 = vpack.c.b16 %v1602, %v1598
        %v1655 = vpack.c.b16 %v1603, %v1599
        %v1656 = vpack.c.b16 %v1604, %v1600
        %v1657 = vpack.c.b16 %v1605, %v1601
        %v1658 = vpack.c.b16 %v1610, %v1606
        %v1659 = vpack.c.b16 %v1611, %v1607
        %v1660 = vpack.c.b16 %v1612, %v1608
        %v1661 = vpack.c.b16 %v1613, %v1609
        %v1662 = vpack.c.b16 %v1618, %v1614
        %v1663 = vpack.c.b16 %v1619, %v1615
        %v1664 = vpack.c.b16 %v1620, %v1616
        %v1665 = vpack.c.b16 %v1621, %v1617
        %v1666 = vpack.c.b16 %v1626, %v1622
        %v1667 = vpack.c.b16 %v1627, %v1623
        %v1668 = vpack.c.b16 %v1628, %v1624
        %v1669 = vpack.c.b16 %v1629, %v1625
        %v1670 = vpack.c.b16 %v1630, %v1630
        %v1671 = vpack.c.b16 %v1631, %v1631
        %v1672 = vpack.c.b16 %v1632, %v1632
        %v1673 = vpack.c.b16 %v1633, %v1633
        %v1711 = vlaneseq
        %v1712 = vshrl.u32 %v1711, 7
        %v1713 = vsub.s32 0, %v1712
        %v1714 = vrot.slane %v1519, %v1713
        %v1715 = vlaneseq
        %v1716 = vshrl.u32 %v1715, 7
        %v1717 = vsub.s32 1, %v1716
        %v1718 = vrot.slane %v1519, %v1717
        %v1719 = vlaneseq
        %v1720 = vshrl.u32 %v1719, 7
        %v1721 = vsub.s32 2, %v1720
        %v1722 = vrot.slane %v1519, %v1721
        %v1723 = vlaneseq
        %v1724 = vshrl.u32 %v1723, 7
        %v1725 = vsub.s32 3, %v1724
        %v1726 = vrot.slane %v1519, %v1725
        %v1732 = vsel %vm1463, %v1480, 0
        %v1735 = vsel %vm677, %v1670, 0
        %v1738 = vsel %vm677, %v1671, 0
        %v1741 = vsel %vm677, %v1672, 0
        %v1744 = vsel %vm677, %v1673, 0
        %1746 = vmatprep.subr.bf16.mxu0 %v1663
        %1747 = vmatpush1.bf16.msra.mxu0 %v1662
        %1748 = vmatprep.subr.bf16.mxu0 %v1659
        %1749 = vmatpush1.bf16.msra.mxu0 %v1658
        %1750 = vmatprep.subr.bf16.mxu0 %v1655
        %1751 = vmatpush1.bf16.msra.mxu0 %v1654
        %1752 = vmatprep.subr.bf16.mxu0 %v1651
        %1753 = vmatpush1.bf16.msra.mxu0 %v1650
        %1754 = vmatprep.subr.bf16.mxu0 %v1647
        %1755 = vmatpush1.bf16.msra.mxu0 %v1646
        %1756 = vmatprep.subr.bf16.mxu0 %v1643
        %1757 = vmatpush1.bf16.msra.mxu0 %v1642
        %1758 = vmatprep.subr.bf16.mxu0 %v1639
        %1759 = vmatpush1.bf16.msra.mxu0 %v1638
        %1760 = vmatprep.subr.bf16.mxu0 %v1635
        %1761 = vmatpush1.bf16.msra.mxu0 %v1634
        %1762 = vmatprep.subr.bf16.mxu0 0
        %1763 = vmatpush2.bf16.msra.mxu0 0
        %1764 = vmatprep.subr.bf16.mxu0 0
        %1765 = vmatpush2.bf16.msra.mxu0 0
        %1766 = vmatprep.subr.bf16.mxu0 0
        %1767 = vmatpush2.bf16.msra.mxu0 0
        %1768 = vmatprep.subr.bf16.mxu0 0
        %1769 = vmatpush2.bf16.msra.mxu0 0
        %1770 = vmatprep.subr.bf16.mxu0 0
        %1771 = vmatpush2.bf16.msra.mxu0 0
        %1772 = vmatprep.subr.bf16.mxu0 0
        %1773 = vmatpush2.bf16.msra.mxu0 0
        %1774 = vmatprep.subr.bf16.mxu0 %v1738
        %1775 = vmatpush2.bf16.msra.mxu0 %v1735
        %1776 = vmatprep.subr.bf16.mxu0 %v1667
        %1777 = vmatpush2.bf16.msra.mxu0 %v1666
        %1778 = vmatprep.mubr.bf16.mxu0 %v1732
        %1779 = vmatmul.mubr.bf16.gmra.mxu0 %v1479
        %v1780 = vpop.f32.mrf.mxu0
        %v1781 = vadd.f32 %v1714, %v1780
        %v1782 = vpop.f32.mrf.mxu0
        %v1783 = vadd.f32 %v1718, %v1782
        %v1784 = vpop.f32.mrf.mxu0
        %v1785 = vpop.f32.mrf.mxu0
        %1786 = vdwg.mxu0
        %1787 = vmatprep.subr.bf16.mxu0 %v1665
        %1788 = vmatpush1.bf16.msra.mxu0 %v1664
        %1789 = vmatprep.subr.bf16.mxu0 %v1661
        %1790 = vmatpush1.bf16.msra.mxu0 %v1660
        %1791 = vmatprep.subr.bf16.mxu0 %v1657
        %1792 = vmatpush1.bf16.msra.mxu0 %v1656
        %1793 = vmatprep.subr.bf16.mxu0 %v1653
        %1794 = vmatpush1.bf16.msra.mxu0 %v1652
        %1795 = vmatprep.subr.bf16.mxu0 %v1649
        %1796 = vmatpush1.bf16.msra.mxu0 %v1648
        %1797 = vmatprep.subr.bf16.mxu0 %v1645
        %1798 = vmatpush1.bf16.msra.mxu0 %v1644
        %1799 = vmatprep.subr.bf16.mxu0 %v1641
        %1800 = vmatpush1.bf16.msra.mxu0 %v1640
        %1801 = vmatprep.subr.bf16.mxu0 %v1637
        %1802 = vmatpush1.bf16.msra.mxu0 %v1636
        %1803 = vmatprep.subr.bf16.mxu0 0
        %1804 = vmatpush2.bf16.msra.mxu0 0
        %1805 = vmatprep.subr.bf16.mxu0 0
        %1806 = vmatpush2.bf16.msra.mxu0 0
        %1807 = vmatprep.subr.bf16.mxu0 0
        %1808 = vmatpush2.bf16.msra.mxu0 0
        %1809 = vmatprep.subr.bf16.mxu0 0
        %1810 = vmatpush2.bf16.msra.mxu0 0
        %1811 = vmatprep.subr.bf16.mxu0 0
        %1812 = vmatpush2.bf16.msra.mxu0 0
        %1813 = vmatprep.subr.bf16.mxu0 0
        %1814 = vmatpush2.bf16.msra.mxu0 0
        %1815 = vmatprep.subr.bf16.mxu0 %v1744
        %1816 = vmatpush2.bf16.msra.mxu0 %v1741
        %1817 = vmatprep.subr.bf16.mxu0 %v1669
        %1818 = vmatpush2.bf16.msra.mxu0 %v1668
        %1819 = vmatprep.mubr.bf16.mxu0 %v1732
        %1820 = vmatmul.mubr.bf16.gmra.mxu0 %v1479
        %v1821 = vpop.f32.mrf.mxu0
        %v1822 = vadd.f32 %v1722, %v1821
        %v1823 = vpop.f32.mrf.mxu0
        %v1824 = vadd.f32 %v1726, %v1823
        %v1825 = vpop.f32.mrf.mxu0
        %v1826 = vpop.f32.mrf.mxu0
        %1827 = vdwg.mxu0
        %v1828 = vld [vmem:[%s14] sm:$0xf]
        %v1830 = vlaneseq
        %v1831 = vshrl.u32 %v1830, 7
        %v1832 = vsub.s32 0, %v1831
        %v1833 = vrot.slane %v1828, %v1832
        %v1834 = vlaneseq
        %v1835 = vshrl.u32 %v1834, 7
        %v1836 = vsub.s32 1, %v1835
        %v1837 = vrot.slane %v1828, %v1836
        %v1838 = vlaneseq
        %v1839 = vshrl.u32 %v1838, 7
        %v1840 = vsub.s32 2, %v1839
        %v1841 = vrot.slane %v1828, %v1840
        %v1842 = vlaneseq
        %v1843 = vshrl.u32 %v1842, 7
        %v1844 = vsub.s32 3, %v1843
        %v1845 = vrot.slane %v1828, %v1844
        %v1850 = vmul.f32 %v1781, %v1833
        %v1851 = vmul.f32 %v1783, %v1837
        %v1852 = vmul.f32 %v1822, %v1841
        %v1853 = vmul.f32 %v1824, %v1845
        %v1854 = vld [vmem:[%s15] sm:$0xf]
        %v1856 = vlaneseq
        %v1857 = vshrl.u32 %v1856, 7
        %v1858 = vsub.s32 0, %v1857
        %v1859 = vrot.slane %v1854, %v1858
        %v1860 = vlaneseq
        %v1861 = vshrl.u32 %v1860, 7
        %v1862 = vsub.s32 1, %v1861
        %v1863 = vrot.slane %v1854, %v1862
        %v1864 = vlaneseq
        %v1865 = vshrl.u32 %v1864, 7
        %v1866 = vsub.s32 2, %v1865
        %v1867 = vrot.slane %v1854, %v1866
        %v1868 = vlaneseq
        %v1869 = vshrl.u32 %v1868, 7
        %v1870 = vsub.s32 3, %v1869
        %v1871 = vrot.slane %v1854, %v1870
        %v1876 = vadd.f32 %v1850, %v1859
        %v1877 = vadd.f32 %v1851, %v1863
        %v1878 = vadd.f32 %v1852, %v1867
        %v1879 = vadd.f32 %v1853, %v1871
        %v1880 = vpack.c.bf16 %v1876, %v1876
        %v1881 = vpack.c.bf16 %v1877, %v1877
        %v1882 = vpack.c.bf16 %v1878, %v1878
        %v1883 = vpack.c.bf16 %v1879, %v1879
        %v1884 = vld [vmem:[%s16] sm:$0xf]
        %v1885 = vld [vmem:[%s16 + $0x4] sm:$0xf]
        %v1886 = vld [vmem:[%s16 + $0x8] sm:$0xf]
        %v1887 = vld [vmem:[%s16 + $0xc] sm:$0xf]
        %v1888 = vld [vmem:[%s16 + $0x10] sm:$0xf]
        %v1889 = vld [vmem:[%s16 + $0x14] sm:$0xf]
        %v1890 = vld [vmem:[%s16 + $0x18] sm:$0xf]
        %v1891 = vld [vmem:[%s16 + $0x1c] sm:$0xf]
        %v1892 = vld [vmem:[%s16 + $0x20] sm:$0xf]
        %v1893 = vld [vmem:[%s16 + $0x24] sm:$0xf]
        %v1894 = vld [vmem:[%s16 + $0x28] sm:$0xf]
        %v1895 = vld [vmem:[%s16 + $0x2c] sm:$0xf]
        %v1896 = vld [vmem:[%s16 + $0x30] sm:$0xf]
        %v1897 = vld [vmem:[%s16 + $0x34] sm:$0xf]
        %v1898 = vld [vmem:[%s16 + $0x38] sm:$0xf]
        %v1899 = vld [vmem:[%s16 + $0x3c] sm:$0xf]
        %v1900 = vld [vmem:[%s16 + $0x40] sm:$0xf]
        %v1901 = vld [vmem:[%s16 + $0x44] sm:$0xf]
        %v1902 = vld [vmem:[%s16 + $0x48] sm:$0xf]
        %v1903 = vld [vmem:[%s16 + $0x4c] sm:$0xf]
        %v1904 = vld [vmem:[%s16 + $0x50] sm:$0xf]
        %v1905 = vld [vmem:[%s16 + $0x54] sm:$0xf]
        %v1906 = vld [vmem:[%s16 + $0x58] sm:$0xf]
        %v1907 = vld [vmem:[%s16 + $0x5c] sm:$0xf]
        %v1908 = vld [vmem:[%s16 + $0x60] sm:$0xf]
        %v1909 = vld [vmem:[%s16 + $0x64] sm:$0xf]
        %v1910 = vld [vmem:[%s16 + $0x68] sm:$0xf]
        %v1911 = vld [vmem:[%s16 + $0x6c] sm:$0xf]
        %v1912 = vld [vmem:[%s16 + $0x70] sm:$0xf]
        %v1913 = vld [vmem:[%s16 + $0x74] sm:$0xf]
        %v1914 = vld [vmem:[%s16 + $0x78] sm:$0xf]
        %v1915 = vld [vmem:[%s16 + $0x7c] sm:$0xf]
        %v1916 = vld [vmem:[%s16 + $0x80] sm:$0xf]
        %v1917 = vld [vmem:[%s16 + $0x84] sm:$0xf]
        %v1918 = vld [vmem:[%s16 + $0x88] sm:$0xf]
        %v1919 = vld [vmem:[%s16 + $0x8c] sm:$0xf]
        %v1920 = vld [vmem:[%s16 + $0x90] sm:$0xf]
        %v1921 = vld [vmem:[%s16 + $0x94] sm:$0xf]
        %v1922 = vld [vmem:[%s16 + $0x98] sm:$0xf]
        %v1923 = vld [vmem:[%s16 + $0x9c] sm:$0xf]
        %v1924 = vld [vmem:[%s16 + $0xa0] sm:$0xf]
        %v1925 = vld [vmem:[%s16 + $0xa4] sm:$0xf]
        %v1926 = vld [vmem:[%s16 + $0xa8] sm:$0xf]
        %v1927 = vld [vmem:[%s16 + $0xac] sm:$0xf]
        %v1928 = vld [vmem:[%s16 + $0xb0] sm:$0xf]
        %v1929 = vld [vmem:[%s16 + $0xb4] sm:$0xf]
        %v1930 = vld [vmem:[%s16 + $0xb8] sm:$0xf]
        %v1931 = vld [vmem:[%s16 + $0xbc] sm:$0xf]
        %v1932 = vld [vmem:[%s16 + $0xc0] sm:$0xf]
        %v1933 = vld [vmem:[%s16 + $0xc4] sm:$0xf]
        %v1934 = vld [vmem:[%s16 + $0xc8] sm:$0xf]
        %v1935 = vld [vmem:[%s16 + $0xcc] sm:$0xf]
        %v1936 = vld [vmem:[%s16 + $0xd0] sm:$0xf]
        %v1937 = vld [vmem:[%s16 + $0xd4] sm:$0xf]
        %v1938 = vld [vmem:[%s16 + $0xd8] sm:$0xf]
        %v1939 = vld [vmem:[%s16 + $0xdc] sm:$0xf]
        %v1940 = vld [vmem:[%s16 + $0xe0] sm:$0xf]
        %v1941 = vld [vmem:[%s16 + $0xe4] sm:$0xf]
        %v1942 = vld [vmem:[%s16 + $0xe8] sm:$0xf]
        %v1943 = vld [vmem:[%s16 + $0xec] sm:$0xf]
        %v1944 = vld [vmem:[%s16 + $0xf0] sm:$0xf]
        %v1945 = vld [vmem:[%s16 + $0xf4] sm:$0xf]
        %v1946 = vld [vmem:[%s16 + $0xf8] sm:$0xf]
        %v1947 = vld [vmem:[%s16 + $0xfc] sm:$0xf]
        %v1948 = vld [vmem:[%s17] sm:$0x1]
        %v2013 = vunpack.c.l.b16 %v1884
        %v2014 = vunpack.c.l.b16 %v1885
        %v2015 = vunpack.c.l.b16 %v1886
        %v2016 = vunpack.c.l.b16 %v1887
        %v2017 = vunpack.c.l.b16 %v1888
        %v2018 = vunpack.c.l.b16 %v1889
        %v2019 = vunpack.c.l.b16 %v1890
        %v2020 = vunpack.c.l.b16 %v1891
        %v2021 = vunpack.c.l.b16 %v1892
        %v2022 = vunpack.c.l.b16 %v1893
        %v2023 = vunpack.c.l.b16 %v1894
        %v2024 = vunpack.c.l.b16 %v1895
        %v2025 = vunpack.c.l.b16 %v1896
        %v2026 = vunpack.c.l.b16 %v1897
        %v2027 = vunpack.c.l.b16 %v1898
        %v2028 = vunpack.c.l.b16 %v1899
        %v2029 = vunpack.c.l.b16 %v1900
        %v2030 = vunpack.c.l.b16 %v1901
        %v2031 = vunpack.c.l.b16 %v1902
        %v2032 = vunpack.c.l.b16 %v1903
        %v2033 = vunpack.c.l.b16 %v1904
        %v2034 = vunpack.c.l.b16 %v1905
        %v2035 = vunpack.c.l.b16 %v1906
        %v2036 = vunpack.c.l.b16 %v1907
        %v2037 = vunpack.c.l.b16 %v1908
        %v2038 = vunpack.c.l.b16 %v1909
        %v2039 = vunpack.c.l.b16 %v1910
        %v2040 = vunpack.c.l.b16 %v1911
        %v2041 = vunpack.c.l.b16 %v1912
        %v2042 = vunpack.c.l.b16 %v1913
        %v2043 = vunpack.c.l.b16 %v1914
        %v2044 = vunpack.c.l.b16 %v1915
        %v2045 = vunpack.c.l.b16 %v1916
        %v2046 = vunpack.c.l.b16 %v1917
        %v2047 = vunpack.c.l.b16 %v1918
        %v2048 = vunpack.c.l.b16 %v1919
        %v2049 = vunpack.c.l.b16 %v1920
        %v2050 = vunpack.c.l.b16 %v1921
        %v2051 = vunpack.c.l.b16 %v1922
        %v2052 = vunpack.c.l.b16 %v1923
        %v2053 = vunpack.c.l.b16 %v1924
        %v2054 = vunpack.c.l.b16 %v1925
        %v2055 = vunpack.c.l.b16 %v1926
        %v2056 = vunpack.c.l.b16 %v1927
        %v2057 = vunpack.c.l.b16 %v1928
        %v2058 = vunpack.c.l.b16 %v1929
        %v2059 = vunpack.c.l.b16 %v1930
        %v2060 = vunpack.c.l.b16 %v1931
        %v2061 = vunpack.c.l.b16 %v1932
        %v2062 = vunpack.c.l.b16 %v1933
        %v2063 = vunpack.c.l.b16 %v1934
        %v2064 = vunpack.c.l.b16 %v1935
        %v2065 = vunpack.c.l.b16 %v1936
        %v2066 = vunpack.c.l.b16 %v1937
        %v2067 = vunpack.c.l.b16 %v1938
        %v2068 = vunpack.c.l.b16 %v1939
        %v2069 = vunpack.c.l.b16 %v1940
        %v2070 = vunpack.c.l.b16 %v1941
        %v2071 = vunpack.c.l.b16 %v1942
        %v2072 = vunpack.c.l.b16 %v1943
        %v2073 = vunpack.c.l.b16 %v1944
        %v2074 = vunpack.c.l.b16 %v1945
        %v2075 = vunpack.c.l.b16 %v1946
        %v2076 = vunpack.c.l.b16 %v1947
        %v2077 = vpack.c.b16 %v2014, %v2013
        %v2078 = vpack.c.b16 %v2016, %v2015
        %v2079 = vpack.c.b16 %v2018, %v2017
        %v2080 = vpack.c.b16 %v2020, %v2019
        %v2081 = vpack.c.b16 %v2022, %v2021
        %v2082 = vpack.c.b16 %v2024, %v2023
        %v2083 = vpack.c.b16 %v2026, %v2025
        %v2084 = vpack.c.b16 %v2028, %v2027
        %v2085 = vpack.c.b16 %v2030, %v2029
        %v2086 = vpack.c.b16 %v2032, %v2031
        %v2087 = vpack.c.b16 %v2034, %v2033
        %v2088 = vpack.c.b16 %v2036, %v2035
        %v2089 = vpack.c.b16 %v2038, %v2037
        %v2090 = vpack.c.b16 %v2040, %v2039
        %v2091 = vpack.c.b16 %v2042, %v2041
        %v2092 = vpack.c.b16 %v2044, %v2043
        %v2093 = vpack.c.b16 %v2046, %v2045
        %v2094 = vpack.c.b16 %v2048, %v2047
        %v2095 = vpack.c.b16 %v2050, %v2049
        %v2096 = vpack.c.b16 %v2052, %v2051
        %v2097 = vpack.c.b16 %v2054, %v2053
        %v2098 = vpack.c.b16 %v2056, %v2055
        %v2099 = vpack.c.b16 %v2058, %v2057
        %v2100 = vpack.c.b16 %v2060, %v2059
        %v2101 = vpack.c.b16 %v2062, %v2061
        %v2102 = vpack.c.b16 %v2064, %v2063
        %v2103 = vpack.c.b16 %v2066, %v2065
        %v2104 = vpack.c.b16 %v2068, %v2067
        %v2105 = vpack.c.b16 %v2070, %v2069
        %v2106 = vpack.c.b16 %v2072, %v2071
        %v2107 = vpack.c.b16 %v2074, %v2073
        %v2108 = vpack.c.b16 %v2076, %v2075
        %2141 = vmatprep.subr.bf16.mxu0 0
        %2142 = vmatpush1.bf16.msra.mxu0 %v2084
        %2143 = vmatprep.subr.bf16.mxu0 0
        %2144 = vmatpush1.bf16.msra.mxu0 %v2083
        %2145 = vmatprep.subr.bf16.mxu0 0
        %2146 = vmatpush1.bf16.msra.mxu0 %v2082
        %2147 = vmatprep.subr.bf16.mxu0 0
        %2148 = vmatpush1.bf16.msra.mxu0 %v2081
        %2149 = vmatprep.subr.bf16.mxu0 0
        %2150 = vmatpush1.bf16.msra.mxu0 %v2080
        %2151 = vmatprep.subr.bf16.mxu0 0
        %2152 = vmatpush1.bf16.msra.mxu0 %v2079
        %2153 = vmatprep.subr.bf16.mxu0 0
        %2154 = vmatpush1.bf16.msra.mxu0 %v2078
        %2155 = vmatprep.subr.bf16.mxu0 0
        %2156 = vmatpush1.bf16.msra.mxu0 %v2077
        %2157 = vmatprep.subr.bf16.mxu0 0
        %2158 = vmatpush2.bf16.msra.mxu0 %v2092
        %2159 = vmatprep.subr.bf16.mxu0 0
        %2160 = vmatpush2.bf16.msra.mxu0 %v2091
        %2161 = vmatprep.subr.bf16.mxu0 0
        %2162 = vmatpush2.bf16.msra.mxu0 %v2090
        %2163 = vmatprep.subr.bf16.mxu0 0
        %2164 = vmatpush2.bf16.msra.mxu0 %v2089
        %2165 = vmatprep.subr.bf16.mxu0 0
        %2166 = vmatpush2.bf16.msra.mxu0 %v2088
        %2167 = vmatprep.subr.bf16.mxu0 0
        %2168 = vmatpush2.bf16.msra.mxu0 %v2087
        %2169 = vmatprep.subr.bf16.mxu0 0
        %2170 = vmatpush2.bf16.msra.mxu0 %v2086
        %2171 = vmatprep.subr.bf16.mxu0 0
        %2172 = vmatpush2.bf16.msra.mxu0 %v2085
        %2173 = vmatprep.mubr.bf16.mxu0 %v1881
        %2174 = vmatmul.mubr.bf16.gmra.mxu0 %v1880
        %v2175 = vpop.f32.mrf.mxu0
        %v2176 = vadd.f32 %v1948, %v2175
        %v2177 = vpop.f32.mrf.mxu0
        %v2178 = vpop.f32.mrf.mxu0
        %v2179 = vpop.f32.mrf.mxu0
        %2180 = vdwg.mxu0
        %2181 = vmatprep.subr.bf16.mxu0 0
        %2182 = vmatpush1.bf16.msra.mxu0 %v2100
        %2183 = vmatprep.subr.bf16.mxu0 0
        %2184 = vmatpush1.bf16.msra.mxu0 %v2099
        %2185 = vmatprep.subr.bf16.mxu0 0
        %2186 = vmatpush1.bf16.msra.mxu0 %v2098
        %2187 = vmatprep.subr.bf16.mxu0 0
        %2188 = vmatpush1.bf16.msra.mxu0 %v2097
        %2189 = vmatprep.subr.bf16.mxu0 0
        %2190 = vmatpush1.bf16.msra.mxu0 %v2096
        %2191 = vmatprep.subr.bf16.mxu0 0
        %2192 = vmatpush1.bf16.msra.mxu0 %v2095
        %2193 = vmatprep.subr.bf16.mxu0 0
        %2194 = vmatpush1.bf16.msra.mxu0 %v2094
        %2195 = vmatprep.subr.bf16.mxu0 0
        %2196 = vmatpush1.bf16.msra.mxu0 %v2093
        %2197 = vmatprep.subr.bf16.mxu0 0
        %2198 = vmatpush2.bf16.msra.mxu0 %v2108
        %2199 = vmatprep.subr.bf16.mxu0 0
        %2200 = vmatpush2.bf16.msra.mxu0 %v2107
        %2201 = vmatprep.subr.bf16.mxu0 0
        %2202 = vmatpush2.bf16.msra.mxu0 %v2106
        %2203 = vmatprep.subr.bf16.mxu0 0
        %2204 = vmatpush2.bf16.msra.mxu0 %v2105
        %2205 = vmatprep.subr.bf16.mxu0 0
        %2206 = vmatpush2.bf16.msra.mxu0 %v2104
        %2207 = vmatprep.subr.bf16.mxu0 0
        %2208 = vmatpush2.bf16.msra.mxu0 %v2103
        %2209 = vmatprep.subr.bf16.mxu0 0
        %2210 = vmatpush2.bf16.msra.mxu0 %v2102
        %2211 = vmatprep.subr.bf16.mxu0 0
        %2212 = vmatpush2.bf16.msra.mxu0 %v2101
        %2213 = vmatprep.mubr.bf16.mxu0 %v1883
        %2214 = vmatmul.mubr.bf16.gmra.mxu0 %v1882
        %v2215 = vpop.f32.mrf.mxu0
        %v2216 = vadd.f32 %v2176, %v2215
        %v2217 = vpop.f32.mrf.mxu0
        %v2218 = vpop.f32.mrf.mxu0
        %v2219 = vpop.f32.mrf.mxu0
        %2220 = vdwg.mxu0
        %v2221 = vld [vmem:[%s18] sm:$0x1]
        %v2222 = vmul.f32 %v2216, %v2221
        %v2223 = vld [vmem:[%s19] sm:$0x1]
        %v2224 = vadd.f32 %v2222, %v2223
        %v2225 = vxor.u32 %v2224, 2147483648
        %v2226 = vmul.f32 %v2225, 1.442695
        %v2227 = vpow.pop %v2226
        %v2228 = vadd.f32 %v2227, 1.0
        %v2229 = vrcp.pop %v2228
        %v2230 = vmul.f32 1.0, %v2229
        %vm2231 = vcmask 139264
        %2232 = vst.msk [vmem:[%s631] sm:$0x1] %vm2231, %v2230
        %s2233 = sand.u32 %s462, 1
        %s2234 = scalar_lea.sflag [#allocation5], %s2233
        %s2235 = sand.u32 %s462, 1
        %s2236 = scalar_lea.vmem [#allocation4], %s2235
        // Predicated region
        $region97: #{graph_action_spotter.1} parent=95 // pred_check
          %p2237 = pneg %p472
        $region98: #{graph_action_spotter.1} parent=95 // pred_check_branch
          %2239 = sbr.rel (%p2237) target = $region100
        $region99: #{graph_action_spotter.1} parent=95 // pred_region
          %s2241 = ssub.s32 16, 16
          %2242 = vsyncadd %s2234, %s2241
          %s2243 = smul.addr %s40, 16
          %s2244 = scalar_lea.hbm %s20, %s2243
          %s2246 = sshll.u32 %s2236, 4
          %s2247 = int_to_ptr.vmem [resolvable:$true] %s2246
          %2249 = dma.vmem_to_hbm [thread:$0]  %s2247, 16, %s2244, %s2234
        $region100: #{graph_action_spotter.1} parent=95 // pred_fallthru
          _
      $region96: #{graph_action_spotter.1} parent=5 // pred_fallthru
        _
      %p2250 = scmp.le.s32.totalorder 2, %s35
      // Predicated region
      $region101: #{graph_action_spotter.1} parent=5 // pred_check
        %p2251 = pneg %p2250
      $region102: #{graph_action_spotter.1} parent=5 // pred_check_branch
        %2253 = sbr.rel (%p2251) target = $region104
      $region103: #{graph_action_spotter.1} parent=5 // pred_region
        %s2254 = ssub.s32 %s35, 2
        // Predicated region
        $region105: #{graph_action_spotter.1} parent=103 // pred_check
          %p2255 = pneg %p478
        $region106: #{graph_action_spotter.1} parent=103 // pred_check_branch
          %2257 = sbr.rel (%p2255) target = $region108
        $region107: #{graph_action_spotter.1} parent=103 // pred_region
          %s2258 = sand.u32 %s463, 1
          %s2259 = scalar_lea.sflag [#allocation5], %s2258
          %s2260 = sand.u32 %s463, 1
          %s2261 = scalar_lea.vmem [#allocation4], %s2260
          %2262 = dma.done %s2259, 16
        $region108: #{graph_action_spotter.1} parent=103 // pred_fallthru
          _
      $region104: #{graph_action_spotter.1} parent=5 // pred_fallthru
        _
    $region6: #{graph_action_spotter.1} parent=1 // loop_footer
      %s39 = sadd.s32 1, %s35
    $region7: #{graph_action_spotter.1} parent=1 // loop_footer_branch
      %34 = sbr.rel target = $region3
    $region8: #{graph_action_spotter.1} parent=1 // loop_exit
      _
    %2263 = vsyncpa [#allocation5], 1
    %s2264 = scalar_lea.sflag [#allocation5], 1
    %2265 = vsyncpa %s2264, 1

</llo_original>
